<compile_context>
chip_gen: v7x
topology: tpu7x:2x2x1
jax: 0.10.0
libtpu: 0.0.40
codegen_flags: <defaults>
</compile_context>

<pallas_src>
import math

import jax
import jax.numpy as jnp
from jax.experimental import pallas as pl
from jax.experimental.pallas import tpu as pltpu

# Small synthetic "BERT" config (stands in for AutoModel.from_pretrained(bert_file)).
B, S, H, NH, NL = 2, 8, 32, 2, 2          # batch, seq, hidden, heads, layers
DH = H // NH                               # head dim
I = 4 * H                                  # FFN intermediate size (= 128, lane-dense)
VOCAB, MAX_POS, NTYPE = 100, 64, 2
LN_EPS = 1e-12

HP = 128                                   # lane-padded hidden (multiple of 128)
BS = B * S                                 # folded row dimension


# ----------------------------- shared math helpers -----------------------------
def _gelu(x):
    # tanh-approximate GELU (EUP-friendly inside the kernel)
    c = math.sqrt(2.0 / math.pi)
    return 0.5 * x * (1.0 + jnp.tanh(c * (x + 0.044715 * x * x * x)))


def _layernorm(x, g, b):                   # reference-side (unpadded) LayerNorm
    mu = jnp.mean(x, axis=-1, keepdims=True)
    var = jnp.mean((x - mu) ** 2, axis=-1, keepdims=True)
    return (x - mu) * jax.lax.rsqrt(var + LN_EPS) * g + b


def _ln_padded(x, g, b):
    # LayerNorm over the first H lanes of a (rows, HP) zero-padded block.
    # g/b are zero-padded, so padded lanes of the output are exactly 0.
    mu = jnp.sum(x, axis=-1, keepdims=True) * (1.0 / H)
    lane = jax.lax.broadcasted_iota(jnp.int32, x.shape, 1)
    xc = jnp.where(lane < H, x - mu, 0.0)
    var = jnp.sum(xc * xc, axis=-1, keepdims=True) * (1.0 / H)
    return xc * jax.lax.rsqrt(var + LN_EPS) * g + b


# --------------------------------- fused Pallas kernel --------------------------
def fused_encoder_kernel(
        emb_ref, bias_ref, ge_ref, be_ref,
        wqkv_ref, bqkv_ref,
        wo_ref, bo_ref, g1_ref, c1_ref,
        w1_ref, b1_ref, w2_ref, b2_ref, g2_ref, c2_ref,
        pw_ref, pb_ref,
        hid_ref, pool_ref):
    l = pl.program_id(0)

    # --- layer-0 prologue: embedding LayerNorm into the resident activation ----
    @pl.when(l == 0)
    def _():
        hid_ref[...] = _ln_padded(emb_ref[...], ge_ref[...], be_ref[...])

    x = hid_ref[...]                        # (BS, HP) f32, resident across layers
    xb = x.astype(jnp.bfloat16)

    # --- fused QKV projection: one (BS,HP)x(HP,3HP) MXU matmul, f32 accumulate --
    qkv = jnp.dot(xb, wqkv_ref[0], preferred_element_type=jnp.float32) + bqkv_ref[0]
    q = qkv[:, 0:HP]                        # 128-lane-aligned static slices (free)
    k = qkv[:, HP:2 * HP]
    v = qkv[:, 2 * HP:3 * HP]

    scale = 1.0 / math.sqrt(DH)
    wo = wo_ref[0]
    attn_blocks = []
    for b in range(B):                      # static loops (B, NH tiny)
        r0 = b * S
        qb, kb, vb = q[r0:r0 + S, :], k[r0:r0 + S, :], v[r0:r0 + S, :]
        bias_b = bias_ref[b:b + 1, :]       # (1, S) additive key mask
        attn_b = jnp.zeros((S, HP), jnp.float32)
        for h in range(NH):
            c0 = h * DH
            qh = qb[:, c0:c0 + DH].astype(jnp.bfloat16)
            kh = kb[:, c0:c0 + DH].astype(jnp.bfloat16)
            vh = vb[:, c0:c0 + DH].astype(jnp.bfloat16)
            # Q · K^T via dot_general on the last dims (no materialized transpose)
            s = jax.lax.dot_general(qh, kh, (((1,), (1,)), ((), ())),
                                    preferred_element_type=jnp.float32) * scale
            s = s + bias_b
            s = s - jnp.max(s, axis=-1, keepdims=True)
            p = jnp.exp(s)
            p = p * pl.reciprocal(jnp.sum(p, axis=-1, keepdims=True), approx=True)
            ctx = jnp.dot(p.astype(jnp.bfloat16), vh,
                          preferred_element_type=jnp.float32)          # (S, DH)
            # accumulate straight into the lane-dense output projection (no concat)
            attn_b = attn_b + jnp.dot(ctx.astype(jnp.bfloat16),
                                      wo[c0:c0 + DH, :],
                                      preferred_element_type=jnp.float32)
        attn_blocks.append(attn_b)
    attn = jnp.concatenate(attn_blocks, axis=0) + bo_ref[0]             # (BS, HP)

    y = _ln_padded(x + attn, g1_ref[0], c1_ref[0])

    # --- FFN --------------------------------------------------------------------
    h1 = _gelu(jnp.dot(y.astype(jnp.bfloat16), w1_ref[0],
                       preferred_element_type=jnp.float32) + b1_ref[0])
    h2 = jnp.dot(h1.astype(jnp.bfloat16), w2_ref[0],
                 preferred_element_type=jnp.float32) + b2_ref[0]
    x_new = _ln_padded(y + h2, g2_ref[0], c2_ref[0])
    hid_ref[...] = x_new

    # --- last-layer epilogue: fused tanh pooler on first token of each sequence -
    @pl.when(l == NL - 1)
    def _():
        x0 = jnp.concatenate([x_new[b * S:b * S + 1, :] for b in range(B)], axis=0)
        pool_ref[...] = jnp.tanh(
            jnp.dot(x0.astype(jnp.bfloat16), pw_ref[...],
                    preferred_element_type=jnp.float32) + pb_ref[...])


# ------------------------------- padding helpers ---------------------------------
def _pad_last(a, n):
    return jnp.pad(a, [(0, 0)] * (a.ndim - 1) + [(0, n - a.shape[-1])])


def _pad2(a, r, c):
    return jnp.pad(a, ((0, r - a.shape[0]), (0, c - a.shape[1])))


# --------------------------- parameters & full forward ---------------------------
def init_params(key):
    # Deterministic synthetic init (stands in for loading pretrained weights).
    keys = jax.random.split(key, 4 + NL)

    def nrm(k, shape):
        return 0.02 * jax.random.normal(k, shape, jnp.float32)

    params = {
        "word_emb": nrm(keys[0], (VOCAB, H)),
        "pos_emb": nrm(keys[1], (MAX_POS, H)),
        "type_emb": nrm(keys[2], (NTYPE, H)),
        "emb_ln_g": jnp.ones((1, H), jnp.float32),
        "emb_ln_b": jnp.zeros((1, H), jnp.float32),
        "pool_w": nrm(keys[3], (H, H)),
        "pool_b": jnp.zeros((1, H), jnp.float32),
        "layers": [],
    }
    for l in range(NL):
        ks = jax.random.split(keys[4 + l], 6)
        lp = {
            "wq": nrm(ks[0], (H, H)), "bq": jnp.zeros((1, H), jnp.float32),
            "wk": nrm(ks[1], (H, H)), "bk": jnp.zeros((1, H), jnp.float32),
            "wv": nrm(ks[2], (H, H)), "bv": jnp.zeros((1, H), jnp.float32),
            "wo": nrm(ks[3], (H, H)), "bo": jnp.zeros((1, H), jnp.float32),
            "g1": jnp.ones((1, H), jnp.float32), "c1": jnp.zeros((1, H), jnp.float32),
            "w1": nrm(ks[4], (H, I)), "b1": jnp.zeros((1, I), jnp.float32),
            "w2": nrm(ks[5], (I, H)), "b2": jnp.zeros((1, H), jnp.float32),
            "g2": jnp.ones((1, H), jnp.float32), "c2": jnp.zeros((1, H), jnp.float32),
        }
        params["layers"].append(lp)
    return params


def bert_encoder_forward(params, token, attention_mask):
    """Returns (last_hidden_state (B,S,H), pooler_output (B,H))."""
    Bq, Sq = token.shape

    # TODO(synk): embedding-table gathers (word/pos/type lookups) stay in plain JAX.
    emb = (jnp.take(params["word_emb"], token, axis=0)
           + params["pos_emb"][None, :Sq, :]
           + params["type_emb"][0][None, None, :])
    emb_p = _pad_last(emb.reshape(Bq * Sq, H), HP)                      # (BS, HP)

    # precompute additive key mask once in the wrapper
    mask_bias = (1.0 - attention_mask.astype(jnp.float32)) * (-1e9)    # (B, S)

    layers = params["layers"]

    def stackw(name, rows, cols):       # stacked, zero-padded, bf16 matmul weights
        return jnp.stack([_pad2(lp[name], rows, cols) for lp in layers]
                         ).astype(jnp.bfloat16)

    def stackv(name, cols):             # stacked, zero-padded f32 row vectors
        return jnp.stack([_pad_last(lp[name], cols) for lp in layers])

    # fused QKV weight / bias: (NL, HP, 3*HP) bf16 and (NL, 1, 3*HP) f32
    wqkv_s = jnp.stack([
        jnp.concatenate([_pad2(lp["wq"], HP, HP),
                         _pad2(lp["wk"], HP, HP),
                         _pad2(lp["wv"], HP, HP)], axis=1)
        for lp in layers]).astype(jnp.bfloat16)
    bqkv_s = jnp.stack([
        jnp.concatenate([_pad_last(lp["bq"], HP),
                         _pad_last(lp["bk"], HP),
                         _pad_last(lp["bv"], HP)], axis=1)
        for lp in layers])

    wo_s = stackw("wo", HP, HP)
    w1_s = stackw("w1", HP, I)
    w2_s = stackw("w2", I, HP)
    bo_s = stackv("bo", HP)
    g1_s, c1_s, g2_s, c2_s = (stackv(n, HP) for n in ("g1", "c1", "g2", "c2"))
    b1_s = stackv("b1", I)
    b2_s = stackv("b2", HP)

    ge = _pad_last(params["emb_ln_g"], HP)
    be = _pad_last(params["emb_ln_b"], HP)
    pw = _pad2(params["pool_w"], HP, HP).astype(jnp.bfloat16)
    pb = _pad_last(params["pool_b"], HP)

    def const_spec(shape):              # fetched once, resident across all layers
        nd = len(shape)
        return pl.BlockSpec(shape, lambda l, _nd=nd: (0,) * _nd)

    def layer_spec(shape):              # selects layer l of a stacked (NL, ...) array
        nd = len(shape)
        return pl.BlockSpec((1,) + tuple(shape[1:]),
                            lambda l, _nd=nd: (l,) + (0,) * (_nd - 1))

    args = (emb_p, mask_bias, ge, be,
            wqkv_s, bqkv_s,
            wo_s, bo_s, g1_s, c1_s,
            w1_s, b1_s, w2_s, b2_s, g2_s, c2_s,
            pw, pb)
    in_specs = ([const_spec(emb_p.shape), const_spec(mask_bias.shape),
                 const_spec(ge.shape), const_spec(be.shape)]
                + [layer_spec(a.shape) for a in
                   (wqkv_s, bqkv_s, wo_s, bo_s,
                    g1_s, c1_s, w1_s, b1_s, w2_s, b2_s, g2_s, c2_s)]
                + [const_spec(pw.shape), const_spec(pb.shape)])

    hid, pooled = pl.pallas_call(
        fused_encoder_kernel,
        grid=(NL,),
        in_specs=in_specs,
        out_specs=[pl.BlockSpec((Bq * Sq, HP), lambda l: (0, 0)),
                   pl.BlockSpec((Bq, HP), lambda l: (0, 0))],
        out_shape=[jax.ShapeDtypeStruct((Bq * Sq, HP), jnp.float32),
                   jax.ShapeDtypeStruct((Bq, HP), jnp.float32)],
        compiler_params=pltpu.CompilerParams(
            dimension_semantics=("arbitrary",)),   # layer axis is sequential
    )(*args)

    last_hidden = hid.reshape(Bq, Sq, HP)[:, :, :H]
    return last_hidden, pooled[:, :H]


# ------------------------------- pure-JAX reference -------------------------------
def reference_forward(params, token, attention_mask):
    hp = jax.lax.Precision.HIGHEST
    Bq, Sq = token.shape
    emb = (jnp.take(params["word_emb"], token, axis=0)
           + params["pos_emb"][None, :Sq, :]
           + params["type_emb"][0][None, None, :])
    x = _layernorm(emb, params["emb_ln_g"], params["emb_ln_b"])
    mask_bias = (1.0 - attention_mask.astype(jnp.float32))[:, None, None, :] * (-1e9)
    for lp in params["layers"]:
        q = jnp.dot(x, lp["wq"], precision=hp) + lp["bq"]
        k = jnp.dot(x, lp["wk"], precision=hp) + lp["bk"]
        v = jnp.dot(x, lp["wv"], precision=hp) + lp["bv"]

        def split(t):
            return t.reshape(Bq, Sq, NH, DH).transpose(0, 2, 1, 3)

        qh, kh, vh = split(q), split(k), split(v)
        s = jnp.einsum("bhqd,bhkd->bhqk", qh, kh, precision=hp) / math.sqrt(DH) + mask_bias
        s = s - jnp.max(s, axis=-1, keepdims=True)
        p = jnp.exp(s)
        p = p / jnp.sum(p, axis=-1, keepdims=True)
        ctx = jnp.einsum("bhqk,bhkd->bhqd", p, vh, precision=hp)
        ctx = ctx.transpose(0, 2, 1, 3).reshape(Bq, Sq, H)
        attn = jnp.dot(ctx, lp["wo"], precision=hp) + lp["bo"]
        y = _layernorm(x + attn, lp["g1"], lp["c1"])
        h1 = _gelu(jnp.dot(y, lp["w1"], precision=hp) + lp["b1"])
        h2 = jnp.dot(h1, lp["w2"], precision=hp) + lp["b2"]
        x = _layernorm(y + h2, lp["g2"], lp["c2"])
    pooled = jnp.tanh(jnp.dot(x[:, 0, :], params["pool_w"], precision=hp) + params["pool_b"])
    return x, pooled


if __name__ == "__main__":
    key = jax.random.PRNGKey(0)
    pkey, tkey = jax.random.split(key)
    params = init_params(pkey)

    token = jax.random.randint(tkey, (B, S), 0, VOCAB, dtype=jnp.int32)
    attention_mask = jnp.array([[1, 1, 1, 1, 1, 1, 1, 1],
                                [1, 1, 1, 1, 1, 0, 0, 0]], dtype=jnp.float32)

    last_hidden, pooled = bert_encoder_forward(params, token, attention_mask)
    jax.block_until_ready((last_hidden, pooled))

    ref_hidden, ref_pooled = reference_forward(params, token, attention_mask)
    assert last_hidden.shape == (B, S, H) and pooled.shape == (B, H)
    assert jnp.allclose(last_hidden, ref_hidden, atol=2e-2, rtol=2e-2)
    assert jnp.allclose(pooled, ref_pooled, atol=2e-2, rtol=2e-2)

    print("KERNEL_OK")
</pallas_src>

<mosaic_0001>
module attributes {stable_mosaic.version = 11 : i64} {
  func.func @fused_encoder_kernel(%arg0: i32, %arg1: memref<16x128xf32, #tpu.memory_space<vmem>>, %arg2: memref<2x8xf32, #tpu.memory_space<vmem>>, %arg3: memref<1x128xf32, #tpu.memory_space<vmem>>, %arg4: memref<1x128xf32, #tpu.memory_space<vmem>>, %arg5: memref<1x128x384xbf16, #tpu.memory_space<vmem>>, %arg6: memref<1x1x384xf32, #tpu.memory_space<vmem>>, %arg7: memref<1x128x128xbf16, #tpu.memory_space<vmem>>, %arg8: memref<1x1x128xf32, #tpu.memory_space<vmem>>, %arg9: memref<1x1x128xf32, #tpu.memory_space<vmem>>, %arg10: memref<1x1x128xf32, #tpu.memory_space<vmem>>, %arg11: memref<1x128x128xbf16, #tpu.memory_space<vmem>>, %arg12: memref<1x1x128xf32, #tpu.memory_space<vmem>>, %arg13: memref<1x128x128xbf16, #tpu.memory_space<vmem>>, %arg14: memref<1x1x128xf32, #tpu.memory_space<vmem>>, %arg15: memref<1x1x128xf32, #tpu.memory_space<vmem>>, %arg16: memref<1x1x128xf32, #tpu.memory_space<vmem>>, %arg17: memref<128x128xbf16, #tpu.memory_space<vmem>>, %arg18: memref<1x128xf32, #tpu.memory_space<vmem>>, %arg19: memref<16x128xf32, #tpu.memory_space<vmem>>, %arg20: memref<2x128xf32, #tpu.memory_space<vmem>>) attributes {dimension_semantics = [#tpu.dimension_semantics<arbitrary>], iteration_bounds = array<i64: 2>, scalar_prefetch = 0 : i64, scratch_operands = 0 : i64, tpu.core_type = #tpu.core_type<tc>, window_params = [{pipeline_mode = #tpu.pipeline_mode<synchronous>, transform_indices = @transform_0, window_bounds = array<i64: 16, 128>}, {pipeline_mode = #tpu.pipeline_mode<synchronous>, transform_indices = @transform_1, window_bounds = array<i64: 2, 8>}, {pipeline_mode = #tpu.pipeline_mode<synchronous>, transform_indices = @transform_2, window_bounds = array<i64: 1, 128>}, {pipeline_mode = #tpu.pipeline_mode<synchronous>, transform_indices = @transform_3, window_bounds = array<i64: 1, 128>}, {transform_indices = @transform_4, window_bounds = array<i64: 1, 128, 384>}, {transform_indices = @transform_5, window_bounds = array<i64: 1, 1, 384>}, {transform_indices = @transform_6, window_bounds = array<i64: 1, 128, 128>}, {transform_indices = @transform_7, window_bounds = array<i64: 1, 1, 128>}, {transform_indices = @transform_8, window_bounds = array<i64: 1, 1, 128>}, {transform_indices = @transform_9, window_bounds = array<i64: 1, 1, 128>}, {transform_indices = @transform_10, window_bounds = array<i64: 1, 128, 128>}, {transform_indices = @transform_11, window_bounds = array<i64: 1, 1, 128>}, {transform_indices = @transform_12, window_bounds = array<i64: 1, 128, 128>}, {transform_indices = @transform_13, window_bounds = array<i64: 1, 1, 128>}, {transform_indices = @transform_14, window_bounds = array<i64: 1, 1, 128>}, {transform_indices = @transform_15, window_bounds = array<i64: 1, 1, 128>}, {pipeline_mode = #tpu.pipeline_mode<synchronous>, transform_indices = @transform_16, window_bounds = array<i64: 128, 128>}, {pipeline_mode = #tpu.pipeline_mode<synchronous>, transform_indices = @transform_17, window_bounds = array<i64: 1, 128>}, {pipeline_mode = #tpu.pipeline_mode<synchronous>, transform_indices = @transform_18, window_bounds = array<i64: 16, 128>}, {pipeline_mode = #tpu.pipeline_mode<synchronous>, transform_indices = @transform_19, window_bounds = array<i64: 2, 128>}]} {
    %c0_i32 = arith.constant 0 : i32
    %0 = arith.cmpi eq, %arg0, %c0_i32 : i32
    %1 = arith.extui %0 : i1 to i32
    %c0_i32_0 = arith.constant 0 : i32
    %2 = arith.cmpi ne, %1, %c0_i32_0 : i32
    scf.if %2 {
      %c0_89 = arith.constant 0 : index
      %c0_90 = arith.constant 0 : index
      %233 = vector.load %arg1[%c0_89, %c0_90] : memref<16x128xf32, #tpu.memory_space<vmem>>, vector<16x128xf32>
      %c0_91 = arith.constant 0 : index
      %c0_92 = arith.constant 0 : index
      %234 = vector.load %arg3[%c0_91, %c0_92] : memref<1x128xf32, #tpu.memory_space<vmem>>, vector<1x128xf32>
      %c0_93 = arith.constant 0 : index
      %c0_94 = arith.constant 0 : index
      %235 = vector.load %arg4[%c0_93, %c0_94] : memref<1x128xf32, #tpu.memory_space<vmem>>, vector<1x128xf32>
      %cst_95 = arith.constant dense<0.000000e+00> : vector<16xf32>
      %236 = vector.multi_reduction <add>, %233, %cst_95 [1] : vector<16x128xf32> to vector<16xf32>
      %237 = vector.shape_cast %236 : vector<16xf32> to vector<16x1xf32>
      %cst_96 = arith.constant 3.125000e-02 : f32
      %238 = vector.broadcast %cst_96 : f32 to vector<16x1xf32>
      %239 = arith.mulf %237, %238 : vector<16x1xf32>
      %240 = tpu.iota {dimensions = array<i32: 1>} : vector<16x128xi32>
      %c32_i32_97 = arith.constant 32 : i32
      %241 = vector.broadcast %c32_i32_97 : i32 to vector<16x128xi32>
      %242 = arith.cmpi slt, %240, %241 : vector<16x128xi32>
      %243 = vector.broadcast %239 : vector<16x1xf32> to vector<16x128xf32>
      %244 = arith.subf %233, %243 : vector<16x128xf32>
      %cst_98 = arith.constant 0.000000e+00 : f32
      %245 = vector.broadcast %cst_98 : f32 to vector<16x128xf32>
      %246 = arith.select %242, %244, %245 : vector<16x128xi1>, vector<16x128xf32>
      %247 = arith.mulf %246, %246 : vector<16x128xf32>
      %cst_99 = arith.constant dense<0.000000e+00> : vector<16xf32>
      %248 = vector.multi_reduction <add>, %247, %cst_99 [1] : vector<16x128xf32> to vector<16xf32>
      %249 = vector.shape_cast %248 : vector<16xf32> to vector<16x1xf32>
      %cst_100 = arith.constant 3.125000e-02 : f32
      %250 = vector.broadcast %cst_100 : f32 to vector<16x1xf32>
      %251 = arith.mulf %249, %250 : vector<16x1xf32>
      %cst_101 = arith.constant 9.99999996E-13 : f32
      %252 = vector.broadcast %cst_101 : f32 to vector<16x1xf32>
      %253 = arith.addf %251, %252 : vector<16x1xf32>
      %254 = math.rsqrt %253 : vector<16x1xf32>
      %255 = vector.broadcast %254 : vector<16x1xf32> to vector<16x128xf32>
      %256 = arith.mulf %246, %255 : vector<16x128xf32>
      %257 = vector.broadcast %234 : vector<1x128xf32> to vector<16x128xf32>
      %258 = arith.mulf %256, %257 : vector<16x128xf32>
      %259 = vector.broadcast %235 : vector<1x128xf32> to vector<16x128xf32>
      %260 = arith.addf %258, %259 : vector<16x128xf32>
      %c0_102 = arith.constant 0 : index
      %c0_103 = arith.constant 0 : index
      %261 = vector.load %arg19[%c0_102, %c0_103] : memref<16x128xf32, #tpu.memory_space<vmem>>, vector<16x128xf32>
      tpu.vector_store %arg19[%c0_102, %c0_103], %260 {strides = array<i32>} : memref<16x128xf32, #tpu.memory_space<vmem>>, vector<16x128xf32>,
    } else {
    }
    %c0 = arith.constant 0 : index
    %c0_1 = arith.constant 0 : index
    %3 = vector.load %arg19[%c0, %c0_1] : memref<16x128xf32, #tpu.memory_space<vmem>>, vector<16x128xf32>
    %4 = arith.truncf %3 : vector<16x128xf32> to vector<16x128xbf16>
    %c0_2 = arith.constant 0 : index
    %c0_3 = arith.constant 0 : index
    %c0_4 = arith.constant 0 : index
    %5 = vector.load %arg5[%c0_2, %c0_3, %c0_4] : memref<1x128x384xbf16, #tpu.memory_space<vmem>>, vector<1x128x384xbf16>
    %6 = vector.shape_cast %5 : vector<1x128x384xbf16> to vector<128x384xbf16>
    %cst = arith.constant dense<0.000000e+00> : vector<16x384xf32>
    %7 = tpu.matmul %4, %6, %cst {dimension_numbers = #tpu.dot_dimension_numbers<[1], [0], [0], [1], [0, 0, 1, 1], [], []>} : vector<16x128xbf16>, vector<128x384xbf16>, vector<16x384xf32> -> vector<16x384xf32>
    %c0_5 = arith.constant 0 : index
    %c0_6 = arith.constant 0 : index
    %c0_7 = arith.constant 0 : index
    %8 = vector.load %arg6[%c0_5, %c0_6, %c0_7] : memref<1x1x384xf32, #tpu.memory_space<vmem>>, vector<1x1x384xf32>
    %9 = vector.shape_cast %8 : vector<1x1x384xf32> to vector<1x384xf32>
    %10 = vector.broadcast %9 : vector<1x384xf32> to vector<16x384xf32>
    %11 = arith.addf %7, %10 : vector<16x384xf32>
    %12 = vector.extract_strided_slice %11 {offsets = [0, 0], sizes = [16, 128], strides = [1, 1]} : vector<16x384xf32> to vector<16x128xf32>
    %13 = vector.extract_strided_slice %11 {offsets = [0, 128], sizes = [16, 128], strides = [1, 1]} : vector<16x384xf32> to vector<16x128xf32>
    %14 = vector.extract_strided_slice %11 {offsets = [0, 256], sizes = [16, 128], strides = [1, 1]} : vector<16x384xf32> to vector<16x128xf32>
    %c0_8 = arith.constant 0 : index
    %c0_9 = arith.constant 0 : index
    %c0_10 = arith.constant 0 : index
    %15 = vector.load %arg7[%c0_8, %c0_9, %c0_10] : memref<1x128x128xbf16, #tpu.memory_space<vmem>>, vector<1x128x128xbf16>
    %16 = vector.shape_cast %15 : vector<1x128x128xbf16> to vector<128x128xbf16>
    %17 = vector.extract_strided_slice %12 {offsets = [0, 0], sizes = [8, 128], strides = [1, 1]} : vector<16x128xf32> to vector<8x128xf32>
    %18 = vector.extract_strided_slice %13 {offsets = [0, 0], sizes = [8, 128], strides = [1, 1]} : vector<16x128xf32> to vector<8x128xf32>
    %19 = vector.extract_strided_slice %14 {offsets = [0, 0], sizes = [8, 128], strides = [1, 1]} : vector<16x128xf32> to vector<8x128xf32>
    %c0_11 = arith.constant 0 : index
    %c0_12 = arith.constant 0 : index
    %20 = vector.load %arg2[%c0_11, %c0_12] : memref<2x8xf32, #tpu.memory_space<vmem>>, vector<1x8xf32>
    %cst_13 = arith.constant 0.000000e+00 : f32
    %21 = vector.broadcast %cst_13 : f32 to vector<8x128xf32>
    %22 = vector.extract_strided_slice %17 {offsets = [0, 0], sizes = [8, 16], strides = [1, 1]} : vector<8x128xf32> to vector<8x16xf32>
    %23 = arith.truncf %22 : vector<8x16xf32> to vector<8x16xbf16>
    %24 = vector.extract_strided_slice %18 {offsets = [0, 0], sizes = [8, 16], strides = [1, 1]} : vector<8x128xf32> to vector<8x16xf32>
    %25 = arith.truncf %24 : vector<8x16xf32> to vector<8x16xbf16>
    %26 = vector.extract_strided_slice %19 {offsets = [0, 0], sizes = [8, 16], strides = [1, 1]} : vector<8x128xf32> to vector<8x16xf32>
    %27 = arith.truncf %26 : vector<8x16xf32> to vector<8x16xbf16>
    %cst_14 = arith.constant dense<0.000000e+00> : vector<8x8xf32>
    %28 = tpu.matmul %23, %25, %cst_14 {dimension_numbers = #tpu.dot_dimension_numbers<[1], [1], [0], [0], [0, 0, 1, 0], [], []>} : vector<8x16xbf16>, vector<8x16xbf16>, vector<8x8xf32> -> vector<8x8xf32>
    %cst_15 = arith.constant 2.500000e-01 : f32
    %29 = vector.broadcast %cst_15 : f32 to vector<8x8xf32>
    %30 = arith.mulf %28, %29 : vector<8x8xf32>
    %31 = vector.broadcast %20 : vector<1x8xf32> to vector<8x8xf32>
    %32 = arith.addf %30, %31 : vector<8x8xf32>
    %cst_16 = arith.constant dense<0xFF800000> : vector<8xf32>
    %33 = vector.multi_reduction <maximumf>, %32, %cst_16 [1] : vector<8x8xf32> to vector<8xf32>
    %34 = vector.shape_cast %33 : vector<8xf32> to vector<8x1xf32>
    %35 = vector.broadcast %34 : vector<8x1xf32> to vector<8x8xf32>
    %36 = arith.subf %32, %35 : vector<8x8xf32>
    %37 = math.exp %36 : vector<8x8xf32>
    %cst_17 = arith.constant dense<0.000000e+00> : vector<8xf32>
    %38 = vector.multi_reduction <add>, %37, %cst_17 [1] : vector<8x8xf32> to vector<8xf32>
    %39 = vector.shape_cast %38 : vector<8xf32> to vector<8x1xf32>
    %40 = tpu.reciprocal %39 {approx = true} : vector<8x1xf32> -> vector<8x1xf32>
    %41 = vector.broadcast %40 : vector<8x1xf32> to vector<8x8xf32>
    %42 = arith.mulf %37, %41 : vector<8x8xf32>
    %43 = arith.truncf %42 : vector<8x8xf32> to vector<8x8xbf16>
    %cst_18 = arith.constant dense<0.000000e+00> : vector<8x16xf32>
    %44 = tpu.matmul %43, %27, %cst_18 {dimension_numbers = #tpu.dot_dimension_numbers<[1], [0], [0], [1], [0, 0, 1, 1], [], []>} : vector<8x8xbf16>, vector<8x16xbf16>, vector<8x16xf32> -> vector<8x16xf32>
    %45 = arith.truncf %44 : vector<8x16xf32> to vector<8x16xbf16>
    %46 = vector.extract_strided_slice %16 {offsets = [0, 0], sizes = [16, 128], strides = [1, 1]} : vector<128x128xbf16> to vector<16x128xbf16>
    %cst_19 = arith.constant dense<0.000000e+00> : vector<8x128xf32>
    %47 = tpu.matmul %45, %46, %cst_19 {dimension_numbers = #tpu.dot_dimension_numbers<[1], [0], [0], [1], [0, 0, 1, 1], [], []>} : vector<8x16xbf16>, vector<16x128xbf16>, vector<8x128xf32> -> vector<8x128xf32>
    %48 = arith.addf %21, %47 : vector<8x128xf32>
    %49 = vector.extract_strided_slice %17 {offsets = [0, 16], sizes = [8, 16], strides = [1, 1]} : vector<8x128xf32> to vector<8x16xf32>
    %50 = arith.truncf %49 : vector<8x16xf32> to vector<8x16xbf16>
    %51 = vector.extract_strided_slice %18 {offsets = [0, 16], sizes = [8, 16], strides = [1, 1]} : vector<8x128xf32> to vector<8x16xf32>
    %52 = arith.truncf %51 : vector<8x16xf32> to vector<8x16xbf16>
    %53 = vector.extract_strided_slice %19 {offsets = [0, 16], sizes = [8, 16], strides = [1, 1]} : vector<8x128xf32> to vector<8x16xf32>
    %54 = arith.truncf %53 : vector<8x16xf32> to vector<8x16xbf16>
    %cst_20 = arith.constant dense<0.000000e+00> : vector<8x8xf32>
    %55 = tpu.matmul %50, %52, %cst_20 {dimension_numbers = #tpu.dot_dimension_numbers<[1], [1], [0], [0], [0, 0, 1, 0], [], []>} : vector<8x16xbf16>, vector<8x16xbf16>, vector<8x8xf32> -> vector<8x8xf32>
    %cst_21 = arith.constant 2.500000e-01 : f32
    %56 = vector.broadcast %cst_21 : f32 to vector<8x8xf32>
    %57 = arith.mulf %55, %56 : vector<8x8xf32>
    %58 = vector.broadcast %20 : vector<1x8xf32> to vector<8x8xf32>
    %59 = arith.addf %57, %58 : vector<8x8xf32>
    %cst_22 = arith.constant dense<0xFF800000> : vector<8xf32>
    %60 = vector.multi_reduction <maximumf>, %59, %cst_22 [1] : vector<8x8xf32> to vector<8xf32>
    %61 = vector.shape_cast %60 : vector<8xf32> to vector<8x1xf32>
    %62 = vector.broadcast %61 : vector<8x1xf32> to vector<8x8xf32>
    %63 = arith.subf %59, %62 : vector<8x8xf32>
    %64 = math.exp %63 : vector<8x8xf32>
    %cst_23 = arith.constant dense<0.000000e+00> : vector<8xf32>
    %65 = vector.multi_reduction <add>, %64, %cst_23 [1] : vector<8x8xf32> to vector<8xf32>
    %66 = vector.shape_cast %65 : vector<8xf32> to vector<8x1xf32>
    %67 = tpu.reciprocal %66 {approx = true} : vector<8x1xf32> -> vector<8x1xf32>
    %68 = vector.broadcast %67 : vector<8x1xf32> to vector<8x8xf32>
    %69 = arith.mulf %64, %68 : vector<8x8xf32>
    %70 = arith.truncf %69 : vector<8x8xf32> to vector<8x8xbf16>
    %cst_24 = arith.constant dense<0.000000e+00> : vector<8x16xf32>
    %71 = tpu.matmul %70, %54, %cst_24 {dimension_numbers = #tpu.dot_dimension_numbers<[1], [0], [0], [1], [0, 0, 1, 1], [], []>} : vector<8x8xbf16>, vector<8x16xbf16>, vector<8x16xf32> -> vector<8x16xf32>
    %72 = arith.truncf %71 : vector<8x16xf32> to vector<8x16xbf16>
    %73 = vector.extract_strided_slice %16 {offsets = [16, 0], sizes = [16, 128], strides = [1, 1]} : vector<128x128xbf16> to vector<16x128xbf16>
    %cst_25 = arith.constant dense<0.000000e+00> : vector<8x128xf32>
    %74 = tpu.matmul %72, %73, %cst_25 {dimension_numbers = #tpu.dot_dimension_numbers<[1], [0], [0], [1], [0, 0, 1, 1], [], []>} : vector<8x16xbf16>, vector<16x128xbf16>, vector<8x128xf32> -> vector<8x128xf32>
    %75 = arith.addf %48, %74 : vector<8x128xf32>
    %76 = vector.extract_strided_slice %12 {offsets = [8, 0], sizes = [8, 128], strides = [1, 1]} : vector<16x128xf32> to vector<8x128xf32>
    %77 = vector.extract_strided_slice %13 {offsets = [8, 0], sizes = [8, 128], strides = [1, 1]} : vector<16x128xf32> to vector<8x128xf32>
    %78 = vector.extract_strided_slice %14 {offsets = [8, 0], sizes = [8, 128], strides = [1, 1]} : vector<16x128xf32> to vector<8x128xf32>
    %c1 = arith.constant 1 : index
    %c0_26 = arith.constant 0 : index
    %79 = vector.load %arg2[%c1, %c0_26] : memref<2x8xf32, #tpu.memory_space<vmem>>, vector<1x8xf32>
    %cst_27 = arith.constant 0.000000e+00 : f32
    %80 = vector.broadcast %cst_27 : f32 to vector<8x128xf32>
    %81 = vector.extract_strided_slice %76 {offsets = [0, 0], sizes = [8, 16], strides = [1, 1]} : vector<8x128xf32> to vector<8x16xf32>
    %82 = arith.truncf %81 : vector<8x16xf32> to vector<8x16xbf16>
    %83 = vector.extract_strided_slice %77 {offsets = [0, 0], sizes = [8, 16], strides = [1, 1]} : vector<8x128xf32> to vector<8x16xf32>
    %84 = arith.truncf %83 : vector<8x16xf32> to vector<8x16xbf16>
    %85 = vector.extract_strided_slice %78 {offsets = [0, 0], sizes = [8, 16], strides = [1, 1]} : vector<8x128xf32> to vector<8x16xf32>
    %86 = arith.truncf %85 : vector<8x16xf32> to vector<8x16xbf16>
    %cst_28 = arith.constant dense<0.000000e+00> : vector<8x8xf32>
    %87 = tpu.matmul %82, %84, %cst_28 {dimension_numbers = #tpu.dot_dimension_numbers<[1], [1], [0], [0], [0, 0, 1, 0], [], []>} : vector<8x16xbf16>, vector<8x16xbf16>, vector<8x8xf32> -> vector<8x8xf32>
    %cst_29 = arith.constant 2.500000e-01 : f32
    %88 = vector.broadcast %cst_29 : f32 to vector<8x8xf32>
    %89 = arith.mulf %87, %88 : vector<8x8xf32>
    %90 = vector.broadcast %79 : vector<1x8xf32> to vector<8x8xf32>
    %91 = arith.addf %89, %90 : vector<8x8xf32>
    %cst_30 = arith.constant dense<0xFF800000> : vector<8xf32>
    %92 = vector.multi_reduction <maximumf>, %91, %cst_30 [1] : vector<8x8xf32> to vector<8xf32>
    %93 = vector.shape_cast %92 : vector<8xf32> to vector<8x1xf32>
    %94 = vector.broadcast %93 : vector<8x1xf32> to vector<8x8xf32>
    %95 = arith.subf %91, %94 : vector<8x8xf32>
    %96 = math.exp %95 : vector<8x8xf32>
    %cst_31 = arith.constant dense<0.000000e+00> : vector<8xf32>
    %97 = vector.multi_reduction <add>, %96, %cst_31 [1] : vector<8x8xf32> to vector<8xf32>
    %98 = vector.shape_cast %97 : vector<8xf32> to vector<8x1xf32>
    %99 = tpu.reciprocal %98 {approx = true} : vector<8x1xf32> -> vector<8x1xf32>
    %100 = vector.broadcast %99 : vector<8x1xf32> to vector<8x8xf32>
    %101 = arith.mulf %96, %100 : vector<8x8xf32>
    %102 = arith.truncf %101 : vector<8x8xf32> to vector<8x8xbf16>
    %cst_32 = arith.constant dense<0.000000e+00> : vector<8x16xf32>
    %103 = tpu.matmul %102, %86, %cst_32 {dimension_numbers = #tpu.dot_dimension_numbers<[1], [0], [0], [1], [0, 0, 1, 1], [], []>} : vector<8x8xbf16>, vector<8x16xbf16>, vector<8x16xf32> -> vector<8x16xf32>
    %104 = arith.truncf %103 : vector<8x16xf32> to vector<8x16xbf16>
    %105 = vector.extract_strided_slice %16 {offsets = [0, 0], sizes = [16, 128], strides = [1, 1]} : vector<128x128xbf16> to vector<16x128xbf16>
    %cst_33 = arith.constant dense<0.000000e+00> : vector<8x128xf32>
    %106 = tpu.matmul %104, %105, %cst_33 {dimension_numbers = #tpu.dot_dimension_numbers<[1], [0], [0], [1], [0, 0, 1, 1], [], []>} : vector<8x16xbf16>, vector<16x128xbf16>, vector<8x128xf32> -> vector<8x128xf32>
    %107 = arith.addf %80, %106 : vector<8x128xf32>
    %108 = vector.extract_strided_slice %76 {offsets = [0, 16], sizes = [8, 16], strides = [1, 1]} : vector<8x128xf32> to vector<8x16xf32>
    %109 = arith.truncf %108 : vector<8x16xf32> to vector<8x16xbf16>
    %110 = vector.extract_strided_slice %77 {offsets = [0, 16], sizes = [8, 16], strides = [1, 1]} : vector<8x128xf32> to vector<8x16xf32>
    %111 = arith.truncf %110 : vector<8x16xf32> to vector<8x16xbf16>
    %112 = vector.extract_strided_slice %78 {offsets = [0, 16], sizes = [8, 16], strides = [1, 1]} : vector<8x128xf32> to vector<8x16xf32>
    %113 = arith.truncf %112 : vector<8x16xf32> to vector<8x16xbf16>
    %cst_34 = arith.constant dense<0.000000e+00> : vector<8x8xf32>
    %114 = tpu.matmul %109, %111, %cst_34 {dimension_numbers = #tpu.dot_dimension_numbers<[1], [1], [0], [0], [0, 0, 1, 0], [], []>} : vector<8x16xbf16>, vector<8x16xbf16>, vector<8x8xf32> -> vector<8x8xf32>
    %cst_35 = arith.constant 2.500000e-01 : f32
    %115 = vector.broadcast %cst_35 : f32 to vector<8x8xf32>
    %116 = arith.mulf %114, %115 : vector<8x8xf32>
    %117 = vector.broadcast %79 : vector<1x8xf32> to vector<8x8xf32>
    %118 = arith.addf %116, %117 : vector<8x8xf32>
    %cst_36 = arith.constant dense<0xFF800000> : vector<8xf32>
    %119 = vector.multi_reduction <maximumf>, %118, %cst_36 [1] : vector<8x8xf32> to vector<8xf32>
    %120 = vector.shape_cast %119 : vector<8xf32> to vector<8x1xf32>
    %121 = vector.broadcast %120 : vector<8x1xf32> to vector<8x8xf32>
    %122 = arith.subf %118, %121 : vector<8x8xf32>
    %123 = math.exp %122 : vector<8x8xf32>
    %cst_37 = arith.constant dense<0.000000e+00> : vector<8xf32>
    %124 = vector.multi_reduction <add>, %123, %cst_37 [1] : vector<8x8xf32> to vector<8xf32>
    %125 = vector.shape_cast %124 : vector<8xf32> to vector<8x1xf32>
    %126 = tpu.reciprocal %125 {approx = true} : vector<8x1xf32> -> vector<8x1xf32>
    %127 = vector.broadcast %126 : vector<8x1xf32> to vector<8x8xf32>
    %128 = arith.mulf %123, %127 : vector<8x8xf32>
    %129 = arith.truncf %128 : vector<8x8xf32> to vector<8x8xbf16>
    %cst_38 = arith.constant dense<0.000000e+00> : vector<8x16xf32>
    %130 = tpu.matmul %129, %113, %cst_38 {dimension_numbers = #tpu.dot_dimension_numbers<[1], [0], [0], [1], [0, 0, 1, 1], [], []>} : vector<8x8xbf16>, vector<8x16xbf16>, vector<8x16xf32> -> vector<8x16xf32>
    %131 = arith.truncf %130 : vector<8x16xf32> to vector<8x16xbf16>
    %132 = vector.extract_strided_slice %16 {offsets = [16, 0], sizes = [16, 128], strides = [1, 1]} : vector<128x128xbf16> to vector<16x128xbf16>
    %cst_39 = arith.constant dense<0.000000e+00> : vector<8x128xf32>
    %133 = tpu.matmul %131, %132, %cst_39 {dimension_numbers = #tpu.dot_dimension_numbers<[1], [0], [0], [1], [0, 0, 1, 1], [], []>} : vector<8x16xbf16>, vector<16x128xbf16>, vector<8x128xf32> -> vector<8x128xf32>
    %134 = arith.addf %107, %133 : vector<8x128xf32>
    %135 = tpu.concatenate %75, %134 in 0 : vector<8x128xf32>, vector<8x128xf32> -> vector<16x128xf32>
    %c0_40 = arith.constant 0 : index
    %c0_41 = arith.constant 0 : index
    %c0_42 = arith.constant 0 : index
    %136 = vector.load %arg8[%c0_40, %c0_41, %c0_42] : memref<1x1x128xf32, #tpu.memory_space<vmem>>, vector<1x1x128xf32>
    %137 = vector.shape_cast %136 : vector<1x1x128xf32> to vector<1x128xf32>
    %138 = vector.broadcast %137 : vector<1x128xf32> to vector<16x128xf32>
    %139 = arith.addf %135, %138 : vector<16x128xf32>
    %140 = arith.addf %3, %139 : vector<16x128xf32>
    %c0_43 = arith.constant 0 : index
    %c0_44 = arith.constant 0 : index
    %c0_45 = arith.constant 0 : index
    %141 = vector.load %arg9[%c0_43, %c0_44, %c0_45] : memref<1x1x128xf32, #tpu.memory_space<vmem>>, vector<1x1x128xf32>
    %142 = vector.shape_cast %141 : vector<1x1x128xf32> to vector<1x128xf32>
    %c0_46 = arith.constant 0 : index
    %c0_47 = arith.constant 0 : index
    %c0_48 = arith.constant 0 : index
    %143 = vector.load %arg10[%c0_46, %c0_47, %c0_48] : memref<1x1x128xf32, #tpu.memory_space<vmem>>, vector<1x1x128xf32>
    %144 = vector.shape_cast %143 : vector<1x1x128xf32> to vector<1x128xf32>
    %cst_49 = arith.constant dense<0.000000e+00> : vector<16xf32>
    %145 = vector.multi_reduction <add>, %140, %cst_49 [1] : vector<16x128xf32> to vector<16xf32>
    %146 = vector.shape_cast %145 : vector<16xf32> to vector<16x1xf32>
    %cst_50 = arith.constant 3.125000e-02 : f32
    %147 = vector.broadcast %cst_50 : f32 to vector<16x1xf32>
    %148 = arith.mulf %146, %147 : vector<16x1xf32>
    %149 = tpu.iota {dimensions = array<i32: 1>} : vector<16x128xi32>
    %c32_i32 = arith.constant 32 : i32
    %150 = vector.broadcast %c32_i32 : i32 to vector<16x128xi32>
    %151 = arith.cmpi slt, %149, %150 : vector<16x128xi32>
    %152 = vector.broadcast %148 : vector<16x1xf32> to vector<16x128xf32>
    %153 = arith.subf %140, %152 : vector<16x128xf32>
    %cst_51 = arith.constant 0.000000e+00 : f32
    %154 = vector.broadcast %cst_51 : f32 to vector<16x128xf32>
    %155 = arith.select %151, %153, %154 : vector<16x128xi1>, vector<16x128xf32>
    %156 = arith.mulf %155, %155 : vector<16x128xf32>
    %cst_52 = arith.constant dense<0.000000e+00> : vector<16xf32>
    %157 = vector.multi_reduction <add>, %156, %cst_52 [1] : vector<16x128xf32> to vector<16xf32>
    %158 = vector.shape_cast %157 : vector<16xf32> to vector<16x1xf32>
    %cst_53 = arith.constant 3.125000e-02 : f32
    %159 = vector.broadcast %cst_53 : f32 to vector<16x1xf32>
    %160 = arith.mulf %158, %159 : vector<16x1xf32>
    %cst_54 = arith.constant 9.99999996E-13 : f32
    %161 = vector.broadcast %cst_54 : f32 to vector<16x1xf32>
    %162 = arith.addf %160, %161 : vector<16x1xf32>
    %163 = math.rsqrt %162 : vector<16x1xf32>
    %164 = vector.broadcast %163 : vector<16x1xf32> to vector<16x128xf32>
    %165 = arith.mulf %155, %164 : vector<16x128xf32>
    %166 = vector.broadcast %142 : vector<1x128xf32> to vector<16x128xf32>
    %167 = arith.mulf %165, %166 : vector<16x128xf32>
    %168 = vector.broadcast %144 : vector<1x128xf32> to vector<16x128xf32>
    %169 = arith.addf %167, %168 : vector<16x128xf32>
    %170 = arith.truncf %169 : vector<16x128xf32> to vector<16x128xbf16>
    %c0_55 = arith.constant 0 : index
    %c0_56 = arith.constant 0 : index
    %c0_57 = arith.constant 0 : index
    %171 = vector.load %arg11[%c0_55, %c0_56, %c0_57] : memref<1x128x128xbf16, #tpu.memory_space<vmem>>, vector<1x128x128xbf16>
    %172 = vector.shape_cast %171 : vector<1x128x128xbf16> to vector<128x128xbf16>
    %cst_58 = arith.constant dense<0.000000e+00> : vector<16x128xf32>
    %173 = tpu.matmul %170, %172, %cst_58 {dimension_numbers = #tpu.dot_dimension_numbers<[1], [0], [0], [1], [0, 0, 1, 1], [], []>} : vector<16x128xbf16>, vector<128x128xbf16>, vector<16x128xf32> -> vector<16x128xf32>
    %c0_59 = arith.constant 0 : index
    %c0_60 = arith.constant 0 : index
    %c0_61 = arith.constant 0 : index
    %174 = vector.load %arg12[%c0_59, %c0_60, %c0_61] : memref<1x1x128xf32, #tpu.memory_space<vmem>>, vector<1x1x128xf32>
    %175 = vector.shape_cast %174 : vector<1x1x128xf32> to vector<1x128xf32>
    %176 = vector.broadcast %175 : vector<1x128xf32> to vector<16x128xf32>
    %177 = arith.addf %173, %176 : vector<16x128xf32>
    %cst_62 = arith.constant 5.000000e-01 : f32
    %178 = vector.broadcast %cst_62 : f32 to vector<16x128xf32>
    %179 = arith.mulf %178, %177 : vector<16x128xf32>
    %cst_63 = arith.constant 4.471500e-02 : f32
    %180 = vector.broadcast %cst_63 : f32 to vector<16x128xf32>
    %181 = arith.mulf %180, %177 : vector<16x128xf32>
    %182 = arith.mulf %181, %177 : vector<16x128xf32>
    %183 = arith.mulf %182, %177 : vector<16x128xf32>
    %184 = arith.addf %177, %183 : vector<16x128xf32>
    %cst_64 = arith.constant 0.797884583 : f32
    %185 = vector.broadcast %cst_64 : f32 to vector<16x128xf32>
    %186 = arith.mulf %185, %184 : vector<16x128xf32>
    %187 = math.tanh %186 : vector<16x128xf32>
    %cst_65 = arith.constant 1.000000e+00 : f32
    %188 = vector.broadcast %cst_65 : f32 to vector<16x128xf32>
    %189 = arith.addf %188, %187 : vector<16x128xf32>
    %190 = arith.mulf %179, %189 : vector<16x128xf32>
    %191 = arith.truncf %190 : vector<16x128xf32> to vector<16x128xbf16>
    %c0_66 = arith.constant 0 : index
    %c0_67 = arith.constant 0 : index
    %c0_68 = arith.constant 0 : index
    %192 = vector.load %arg13[%c0_66, %c0_67, %c0_68] : memref<1x128x128xbf16, #tpu.memory_space<vmem>>, vector<1x128x128xbf16>
    %193 = vector.shape_cast %192 : vector<1x128x128xbf16> to vector<128x128xbf16>
    %cst_69 = arith.constant dense<0.000000e+00> : vector<16x128xf32>
    %194 = tpu.matmul %191, %193, %cst_69 {dimension_numbers = #tpu.dot_dimension_numbers<[1], [0], [0], [1], [0, 0, 1, 1], [], []>} : vector<16x128xbf16>, vector<128x128xbf16>, vector<16x128xf32> -> vector<16x128xf32>
    %c0_70 = arith.constant 0 : index
    %c0_71 = arith.constant 0 : index
    %c0_72 = arith.constant 0 : index
    %195 = vector.load %arg14[%c0_70, %c0_71, %c0_72] : memref<1x1x128xf32, #tpu.memory_space<vmem>>, vector<1x1x128xf32>
    %196 = vector.shape_cast %195 : vector<1x1x128xf32> to vector<1x128xf32>
    %197 = vector.broadcast %196 : vector<1x128xf32> to vector<16x128xf32>
    %198 = arith.addf %194, %197 : vector<16x128xf32>
    %199 = arith.addf %169, %198 : vector<16x128xf32>
    %c0_73 = arith.constant 0 : index
    %c0_74 = arith.constant 0 : index
    %c0_75 = arith.constant 0 : index
    %200 = vector.load %arg15[%c0_73, %c0_74, %c0_75] : memref<1x1x128xf32, #tpu.memory_space<vmem>>, vector<1x1x128xf32>
    %201 = vector.shape_cast %200 : vector<1x1x128xf32> to vector<1x128xf32>
    %c0_76 = arith.constant 0 : index
    %c0_77 = arith.constant 0 : index
    %c0_78 = arith.constant 0 : index
    %202 = vector.load %arg16[%c0_76, %c0_77, %c0_78] : memref<1x1x128xf32, #tpu.memory_space<vmem>>, vector<1x1x128xf32>
    %203 = vector.shape_cast %202 : vector<1x1x128xf32> to vector<1x128xf32>
    %cst_79 = arith.constant dense<0.000000e+00> : vector<16xf32>
    %204 = vector.multi_reduction <add>, %199, %cst_79 [1] : vector<16x128xf32> to vector<16xf32>
    %205 = vector.shape_cast %204 : vector<16xf32> to vector<16x1xf32>
    %cst_80 = arith.constant 3.125000e-02 : f32
    %206 = vector.broadcast %cst_80 : f32 to vector<16x1xf32>
    %207 = arith.mulf %205, %206 : vector<16x1xf32>
    %208 = tpu.iota {dimensions = array<i32: 1>} : vector<16x128xi32>
    %c32_i32_81 = arith.constant 32 : i32
    %209 = vector.broadcast %c32_i32_81 : i32 to vector<16x128xi32>
    %210 = arith.cmpi slt, %208, %209 : vector<16x128xi32>
    %211 = vector.broadcast %207 : vector<16x1xf32> to vector<16x128xf32>
    %212 = arith.subf %199, %211 : vector<16x128xf32>
    %cst_82 = arith.constant 0.000000e+00 : f32
    %213 = vector.broadcast %cst_82 : f32 to vector<16x128xf32>
    %214 = arith.select %210, %212, %213 : vector<16x128xi1>, vector<16x128xf32>
    %215 = arith.mulf %214, %214 : vector<16x128xf32>
    %cst_83 = arith.constant dense<0.000000e+00> : vector<16xf32>
    %216 = vector.multi_reduction <add>, %215, %cst_83 [1] : vector<16x128xf32> to vector<16xf32>
    %217 = vector.shape_cast %216 : vector<16xf32> to vector<16x1xf32>
    %cst_84 = arith.constant 3.125000e-02 : f32
    %218 = vector.broadcast %cst_84 : f32 to vector<16x1xf32>
    %219 = arith.mulf %217, %218 : vector<16x1xf32>
    %cst_85 = arith.constant 9.99999996E-13 : f32
    %220 = vector.broadcast %cst_85 : f32 to vector<16x1xf32>
    %221 = arith.addf %219, %220 : vector<16x1xf32>
    %222 = math.rsqrt %221 : vector<16x1xf32>
    %223 = vector.broadcast %222 : vector<16x1xf32> to vector<16x128xf32>
    %224 = arith.mulf %214, %223 : vector<16x128xf32>
    %225 = vector.broadcast %201 : vector<1x128xf32> to vector<16x128xf32>
    %226 = arith.mulf %224, %225 : vector<16x128xf32>
    %227 = vector.broadcast %203 : vector<1x128xf32> to vector<16x128xf32>
    %228 = arith.addf %226, %227 : vector<16x128xf32>
    %c0_86 = arith.constant 0 : index
    %c0_87 = arith.constant 0 : index
    %229 = vector.load %arg19[%c0_86, %c0_87] : memref<16x128xf32, #tpu.memory_space<vmem>>, vector<16x128xf32>
    tpu.vector_store %arg19[%c0_86, %c0_87], %228 {strides = array<i32>} : memref<16x128xf32, #tpu.memory_space<vmem>>, vector<16x128xf32>,
    %c1_i32 = arith.constant 1 : i32
    %230 = arith.cmpi eq, %arg0, %c1_i32 : i32
    %231 = arith.extui %230 : i1 to i32
    %c0_i32_88 = arith.constant 0 : i32
    %232 = arith.cmpi ne, %231, %c0_i32_88 : i32
    scf.if %232 {
      %233 = vector.extract_strided_slice %228 {offsets = [0, 0], sizes = [1, 128], strides = [1, 1]} : vector<16x128xf32> to vector<1x128xf32>
      %234 = vector.extract_strided_slice %228 {offsets = [8, 0], sizes = [1, 128], strides = [1, 1]} : vector<16x128xf32> to vector<1x128xf32>
      %235 = tpu.concatenate %233, %234 in 0 : vector<1x128xf32>, vector<1x128xf32> -> vector<2x128xf32>
      %236 = arith.truncf %235 : vector<2x128xf32> to vector<2x128xbf16>
      %c0_89 = arith.constant 0 : index
      %c0_90 = arith.constant 0 : index
      %237 = vector.load %arg17[%c0_89, %c0_90] : memref<128x128xbf16, #tpu.memory_space<vmem>>, vector<128x128xbf16>
      %cst_91 = arith.constant dense<0.000000e+00> : vector<2x128xf32>
      %238 = tpu.matmul %236, %237, %cst_91 {dimension_numbers = #tpu.dot_dimension_numbers<[1], [0], [0], [1], [0, 0, 1, 1], [], []>} : vector<2x128xbf16>, vector<128x128xbf16>, vector<2x128xf32> -> vector<2x128xf32>
      %c0_92 = arith.constant 0 : index
      %c0_93 = arith.constant 0 : index
      %239 = vector.load %arg18[%c0_92, %c0_93] : memref<1x128xf32, #tpu.memory_space<vmem>>, vector<1x128xf32>
      %240 = vector.broadcast %239 : vector<1x128xf32> to vector<2x128xf32>
      %241 = arith.addf %238, %240 : vector<2x128xf32>
      %242 = math.tanh %241 : vector<2x128xf32>
      %c0_94 = arith.constant 0 : index
      %c0_95 = arith.constant 0 : index
      %243 = vector.load %arg20[%c0_94, %c0_95] : memref<2x128xf32, #tpu.memory_space<vmem>>, vector<2x128xf32>
      tpu.vector_store %arg20[%c0_94, %c0_95], %242 {strides = array<i32>} : memref<2x128xf32, #tpu.memory_space<vmem>>, vector<2x128xf32>,
    } else {
    }
    return
  }
  func.func @transform_0(%arg0: i32) -> (i32, i32) {
    %c0_i32 = arith.constant 0 : i32
    %c0_i32_0 = arith.constant 0 : i32
    %c0_i32_1 = arith.constant 0 : i32
    return %c0_i32, %c0_i32_0 : i32, i32
  }
  func.func @transform_1(%arg0: i32) -> (i32, i32) {
    %c0_i32 = arith.constant 0 : i32
    %c0_i32_0 = arith.constant 0 : i32
    %c0_i32_1 = arith.constant 0 : i32
    return %c0_i32, %c0_i32_0 : i32, i32
  }
  func.func @transform_2(%arg0: i32) -> (i32, i32) {
    %c0_i32 = arith.constant 0 : i32
    %c0_i32_0 = arith.constant 0 : i32
    %c0_i32_1 = arith.constant 0 : i32
    return %c0_i32, %c0_i32_0 : i32, i32
  }
  func.func @transform_3(%arg0: i32) -> (i32, i32) {
    %c0_i32 = arith.constant 0 : i32
    %c0_i32_0 = arith.constant 0 : i32
    %c0_i32_1 = arith.constant 0 : i32
    return %c0_i32, %c0_i32_0 : i32, i32
  }
  func.func @transform_4(%arg0: i32) -> (i32, i32, i32) {
    %c0_i32 = arith.constant 0 : i32
    %c0_i32_0 = arith.constant 0 : i32
    %c0_i32_1 = arith.constant 0 : i32
    return %arg0, %c0_i32, %c0_i32_0 : i32, i32, i32
  }
  func.func @transform_5(%arg0: i32) -> (i32, i32, i32) {
    %c0_i32 = arith.constant 0 : i32
    %c0_i32_0 = arith.constant 0 : i32
    %c0_i32_1 = arith.constant 0 : i32
    return %arg0, %c0_i32, %c0_i32_0 : i32, i32, i32
  }
  func.func @transform_6(%arg0: i32) -> (i32, i32, i32) {
    %c0_i32 = arith.constant 0 : i32
    %c0_i32_0 = arith.constant 0 : i32
    %c0_i32_1 = arith.constant 0 : i32
    return %arg0, %c0_i32, %c0_i32_0 : i32, i32, i32
  }
  func.func @transform_7(%arg0: i32) -> (i32, i32, i32) {
    %c0_i32 = arith.constant 0 : i32
    %c0_i32_0 = arith.constant 0 : i32
    %c0_i32_1 = arith.constant 0 : i32
    return %arg0, %c0_i32, %c0_i32_0 : i32, i32, i32
  }
  func.func @transform_8(%arg0: i32) -> (i32, i32, i32) {
    %c0_i32 = arith.constant 0 : i32
    %c0_i32_0 = arith.constant 0 : i32
    %c0_i32_1 = arith.constant 0 : i32
    return %arg0, %c0_i32, %c0_i32_0 : i32, i32, i32
  }
  func.func @transform_9(%arg0: i32) -> (i32, i32, i32) {
    %c0_i32 = arith.constant 0 : i32
    %c0_i32_0 = arith.constant 0 : i32
    %c0_i32_1 = arith.constant 0 : i32
    return %arg0, %c0_i32, %c0_i32_0 : i32, i32, i32
  }
  func.func @transform_10(%arg0: i32) -> (i32, i32, i32) {
    %c0_i32 = arith.constant 0 : i32
    %c0_i32_0 = arith.constant 0 : i32
    %c0_i32_1 = arith.constant 0 : i32
    return %arg0, %c0_i32, %c0_i32_0 : i32, i32, i32
  }
  func.func @transform_11(%arg0: i32) -> (i32, i32, i32) {
    %c0_i32 = arith.constant 0 : i32
    %c0_i32_0 = arith.constant 0 : i32
    %c0_i32_1 = arith.constant 0 : i32
    return %arg0, %c0_i32, %c0_i32_0 : i32, i32, i32
  }
  func.func @transform_12(%arg0: i32) -> (i32, i32, i32) {
    %c0_i32 = arith.constant 0 : i32
    %c0_i32_0 = arith.constant 0 : i32
    %c0_i32_1 = arith.constant 0 : i32
    return %arg0, %c0_i32, %c0_i32_0 : i32, i32, i32
  }
  func.func @transform_13(%arg0: i32) -> (i32, i32, i32) {
    %c0_i32 = arith.constant 0 : i32
    %c0_i32_0 = arith.constant 0 : i32
    %c0_i32_1 = arith.constant 0 : i32
    return %arg0, %c0_i32, %c0_i32_0 : i32, i32, i32
  }
  func.func @transform_14(%arg0: i32) -> (i32, i32, i32) {
    %c0_i32 = arith.constant 0 : i32
    %c0_i32_0 = arith.constant 0 : i32
    %c0_i32_1 = arith.constant 0 : i32
    return %arg0, %c0_i32, %c0_i32_0 : i32, i32, i32
  }
  func.func @transform_15(%arg0: i32) -> (i32, i32, i32) {
    %c0_i32 = arith.constant 0 : i32
    %c0_i32_0 = arith.constant 0 : i32
    %c0_i32_1 = arith.constant 0 : i32
    return %arg0, %c0_i32, %c0_i32_0 : i32, i32, i32
  }
  func.func @transform_16(%arg0: i32) -> (i32, i32) {
    %c0_i32 = arith.constant 0 : i32
    %c0_i32_0 = arith.constant 0 : i32
    %c0_i32_1 = arith.constant 0 : i32
    return %c0_i32, %c0_i32_0 : i32, i32
  }
  func.func @transform_17(%arg0: i32) -> (i32, i32) {
    %c0_i32 = arith.constant 0 : i32
    %c0_i32_0 = arith.constant 0 : i32
    %c0_i32_1 = arith.constant 0 : i32
    return %c0_i32, %c0_i32_0 : i32, i32
  }
  func.func @transform_18(%arg0: i32) -> (i32, i32) {
    %c0_i32 = arith.constant 0 : i32
    %c0_i32_0 = arith.constant 0 : i32
    %c0_i32_1 = arith.constant 0 : i32
    return %c0_i32, %c0_i32_0 : i32, i32
  }
  func.func @transform_19(%arg0: i32) -> (i32, i32) {
    %c0_i32 = arith.constant 0 : i32
    %c0_i32_0 = arith.constant 0 : i32
    %c0_i32_1 = arith.constant 0 : i32
    return %c0_i32, %c0_i32_0 : i32, i32
  }
}

</mosaic_0001>

<llo_original>
// kernel: tpu_custom_call.1
$region0: #{tpu_custom_call.1}
  #allocation0 [shape = 'u32[]', space=smem, size = 0x4, offset = 0x4, fixed_abs, tag = 'smem constant byte address 0x4 - core index']
  #allocation1 [shape = 'u32[144,128]{1,0:T(1,128)}', space=vmem, size = 0x12000, scoped, tag = 'internal scratch']
  %s0 = inlined_call_operand.hbm [shape: f32[16,128], index: 0, kind: input, shape index: {}]
  %s1 = inlined_call_operand.vmem [shape: f32[2,8], index: 1, kind: input, shape index: {}]
  %s2 = inlined_call_operand.hbm [shape: f32[1,128], index: 2, kind: input, shape index: {}]
  %s3 = inlined_call_operand.hbm [shape: f32[1,128], index: 3, kind: input, shape index: {}]
  %s4 = inlined_call_operand.hbm [shape: bf16[2,128,384], index: 4, kind: input, shape index: {}]
  %s5 = inlined_call_operand.vmem [shape: f32[2,1,384], index: 5, kind: input, shape index: {}]
  %s6 = inlined_call_operand.hbm [shape: bf16[2,128,128], index: 6, kind: input, shape index: {}]
  %s7 = inlined_call_operand.vmem [shape: f32[2,1,128], index: 7, kind: input, shape index: {}]
  %s8 = inlined_call_operand.vmem [shape: f32[2,1,128], index: 8, kind: input, shape index: {}]
  %s9 = inlined_call_operand.vmem [shape: f32[2,1,128], index: 9, kind: input, shape index: {}]
  %s10 = inlined_call_operand.hbm [shape: bf16[2,128,128], index: 10, kind: input, shape index: {}]
  %s11 = inlined_call_operand.vmem [shape: f32[2,1,128], index: 11, kind: input, shape index: {}]
  %s12 = inlined_call_operand.hbm [shape: bf16[2,128,128], index: 12, kind: input, shape index: {}]
  %s13 = inlined_call_operand.vmem [shape: f32[2,1,128], index: 13, kind: input, shape index: {}]
  %s14 = inlined_call_operand.vmem [shape: f32[2,1,128], index: 14, kind: input, shape index: {}]
  %s15 = inlined_call_operand.vmem [shape: f32[2,1,128], index: 15, kind: input, shape index: {}]
  %s16 = inlined_call_operand.hbm [shape: bf16[128,128], index: 16, kind: input, shape index: {}]
  %s17 = inlined_call_operand.vmem [shape: f32[1,128], index: 17, kind: input, shape index: {}]
  %s18 = inlined_call_operand.hbm [shape: f32[16,128], index: 18, kind: output, shape index: {0}]
  %s19 = inlined_call_operand.hbm [shape: f32[2,128], index: 19, kind: output, shape index: {1}]
  %20 = xla_tuple %s18, %s19
  %s21 = sld [smem:[#allocation0]]
  $region153: #{tpu_custom_call.1} parent=0
    _
  %s23 = ssub.s32 1, %s21
  %s24 = scalar_select 0, %s23, %s21
  $region1: #{tpu_custom_call.1} parent=0
    #allocation2 [shape = 'u8[8192]{0}', space=vmem, size = 0x2000, scoped, tag = 'input window, operand 0, single buffered']
    #allocation3 [shape = 's32[2]{0}', space=sflag, size = 0x8, scoped, tag = 'scoped memory for tpu_custom_call.1']
    #allocation4 [shape = 's32[2]{0}', space=sflag, size = 0x8, scoped, tag = 'scoped memory for tpu_custom_call.1']
    #allocation5 [shape = 'u8[512]{0}', space=vmem, size = 0x400, scoped, tag = 'input window, operand 2, single buffered']
    #allocation6 [shape = 's32[1]{0}', space=sflag, size = 0x4, scoped, tag = 'scoped memory for tpu_custom_call.1']
    #allocation7 [shape = 'u8[512]{0}', space=vmem, size = 0x400, scoped, tag = 'input window, operand 3, single buffered']
    #allocation8 [shape = 'u8[196608]{0}', space=vmem, size = 0x30000, scoped, tag = 'input window, operand 4']
    #allocation9 [shape = 's32[2]{0}', space=sflag, size = 0x8, scoped, tag = 'scoped memory for tpu_custom_call.1']
    #allocation10 [shape = 'u8[65536]{0}', space=vmem, size = 0x10000, scoped, tag = 'input window, operand 6']
    #allocation11 [shape = 'u8[65536]{0}', space=vmem, size = 0x10000, scoped, tag = 'input window, operand 10']
    #allocation12 [shape = 's32[2]{0}', space=sflag, size = 0x8, scoped, tag = 'scoped memory for tpu_custom_call.1']
    #allocation13 [shape = 'u8[65536]{0}', space=vmem, size = 0x10000, scoped, tag = 'input window, operand 12']
    #allocation14 [shape = 'u8[32768]{0}', space=vmem, size = 0x8000, scoped, tag = 'input window, operand 16, single buffered']
    #allocation15 [shape = 's32[1]{0}', space=sflag, size = 0x4, scoped, tag = 'scoped memory for tpu_custom_call.1']
    #allocation16 [shape = 'u8[8192]{0}', space=vmem, size = 0x2000, scoped, tag = 'output window, operand 0, single buffered']
    #allocation17 [shape = 'u8[1024]{0}', space=vmem, size = 0x400, scoped, tag = 'output window, operand 1, single buffered']
    #allocation18 [shape = 's32[1]{0}', space=sflag, size = 0x4, scoped, tag = 'scoped memory for tpu_custom_call.1']
    %25 = vsyncpa [#allocation3], 0
    %26 = vsyncpa [#allocation6], 0
    %27 = vsyncpa [#allocation9], 0
    %s28 = scalar_lea.sflag [#allocation9], 1
    %29 = vsyncpa %s28, 0
    %30 = vsyncpa [#allocation12], 0
    %s31 = scalar_lea.sflag [#allocation12], 1
    %32 = vsyncpa %s31, 0
    %33 = vsyncpa [#allocation15], 0
    %34 = vsyncpa [#allocation4], 0
    %35 = vsyncpa [#allocation18], 0
    loop: start=0, step=1, limit=4
    $region2: #{tpu_custom_call.1} parent=1 // loop_pre_header
      _
    $region3: #{tpu_custom_call.1} parent=1 // loop_header
      %s37 = sphi 0, %s41
      %p38 = scmp.ge.s32.totalorder %s37, 4
      %s45 = sphi 0, %s45
      %s47 = sphi 0, %s45
      %s48 = sphi 0, %s47
      %s62 = sphi 0, %s48
      %s66 = sphi 0, %s66
      %s68 = sphi 0, %s66
      %s69 = sphi 0, %s68
      %s83 = sphi 0, %s69
      %s87 = sphi 0, %s87
      %s89 = sphi 0, %s87
      %s90 = sphi 0, %s89
      %s104 = sphi 0, %s90
      %s108 = sphi 0, %s108
      %s110 = sphi 0, %s108
      %s111 = sphi 0, %s110
      %s125 = sphi 0, %s111
      %s131 = sphi 0, %s133
      %s134 = sphi 0, %s131
      %s135 = sphi 0, %s134
      %s151 = sphi 0, %s135
      %s157 = sphi 0, %s159
      %s160 = sphi 0, %s157
      %s161 = sphi 0, %s160
      %s177 = sphi 0, %s161
      %s183 = sphi 0, %s185
      %s186 = sphi 0, %s183
      %s187 = sphi 0, %s186
      %s203 = sphi 0, %s187
      %s209 = sphi 0, %s211
      %s212 = sphi 0, %s209
      %s213 = sphi 0, %s212
      %s229 = sphi 0, %s213
      %s235 = sphi 0, %s237
      %s238 = sphi 0, %s235
      %s239 = sphi 0, %s238
      %s255 = sphi 0, %s239
      %s261 = sphi 0, %s263
      %s264 = sphi 0, %s261
      %s265 = sphi 0, %s264
      %s281 = sphi 0, %s265
      %s287 = sphi 0, %s289
      %s290 = sphi 0, %s287
      %s291 = sphi 0, %s290
      %s307 = sphi 0, %s291
      %s313 = sphi 0, %s315
      %s316 = sphi 0, %s313
      %s317 = sphi 0, %s316
      %s333 = sphi 0, %s317
      %s339 = sphi 0, %s341
      %s342 = sphi 0, %s339
      %s343 = sphi 0, %s342
      %s359 = sphi 0, %s343
      %s365 = sphi 0, %s367
      %s368 = sphi 0, %s365
      %s369 = sphi 0, %s368
      %s385 = sphi 0, %s369
      %s391 = sphi 0, %s393
      %s394 = sphi 0, %s391
      %s395 = sphi 0, %s394
      %s411 = sphi 0, %s395
      %s417 = sphi 0, %s419
      %s420 = sphi 0, %s417
      %s421 = sphi 0, %s420
      %s437 = sphi 0, %s421
      %s441 = sphi 0, %s441
      %s443 = sphi 0, %s441
      %s444 = sphi 0, %s443
      %s458 = sphi 0, %s444
      %s462 = sphi 0, %s462
      %s464 = sphi 0, %s462
      %s465 = sphi 0, %s464
      %s479 = sphi 0, %s465
      %s483 = sphi 0, %s483
      %s485 = sphi 0, %s483
      %s486 = sphi 0, %s485
      %s500 = sphi 0, %s486
      %s504 = sphi 0, %s504
      %s506 = sphi 0, %s504
      %s507 = sphi 0, %s506
      %s521 = sphi 0, %s507
    $region4: #{tpu_custom_call.1} parent=1 // loop_header_branch
      %40 = sbr.rel (%p38) target = $region8
    $region5: #{tpu_custom_call.1} parent=1 // loop_body
      %s42 = ssub.s32 %s37, 1
      %s43 = ssub.s32 %s37, 2
      %s44 = sadd.s32 %s37, 1
      %s46 = sadd.s32 %s45, 1
      %p49 = scmp.eq.s32.totalorder %s37, 1
      %p50 = scmp.ne.s32.totalorder %s45, %s47
      %p51 = scmp.eq.s32.totalorder %s37, 0
      %p52 = por %p50, %p51
      %p53 = scmp.ne.s32.totalorder %s45, %s47
      %p54 = scmp.eq.s32.totalorder %s42, 1
      %p55 = por %p53, %p54
      %p56 = scmp.ne.s32.totalorder %s47, %s48
      %p57 = scmp.eq.s32.totalorder %s42, 0
      %p58 = por %p56, %p57
      %p59 = scmp.ne.s32.totalorder %s47, %s48
      %p60 = scmp.eq.s32.totalorder %s43, 1
      %p61 = por %p59, %p60
      %p63 = scmp.ne.s32.totalorder %s48, %s62
      %p64 = scmp.eq.s32.totalorder %s43, 0
      %p65 = por %p63, %p64
      %s67 = sadd.s32 %s66, 1
      %p70 = scmp.eq.s32.totalorder %s37, 1
      %p71 = scmp.ne.s32.totalorder %s66, %s68
      %p72 = scmp.eq.s32.totalorder %s37, 0
      %p73 = por %p71, %p72
      %p74 = scmp.ne.s32.totalorder %s66, %s68
      %p75 = scmp.eq.s32.totalorder %s42, 1
      %p76 = por %p74, %p75
      %p77 = scmp.ne.s32.totalorder %s68, %s69
      %p78 = scmp.eq.s32.totalorder %s42, 0
      %p79 = por %p77, %p78
      %p80 = scmp.ne.s32.totalorder %s68, %s69
      %p81 = scmp.eq.s32.totalorder %s43, 1
      %p82 = por %p80, %p81
      %p84 = scmp.ne.s32.totalorder %s69, %s83
      %p85 = scmp.eq.s32.totalorder %s43, 0
      %p86 = por %p84, %p85
      %s88 = sadd.s32 %s87, 1
      %p91 = scmp.eq.s32.totalorder %s37, 1
      %p92 = scmp.ne.s32.totalorder %s87, %s89
      %p93 = scmp.eq.s32.totalorder %s37, 0
      %p94 = por %p92, %p93
      %p95 = scmp.ne.s32.totalorder %s87, %s89
      %p96 = scmp.eq.s32.totalorder %s42, 1
      %p97 = por %p95, %p96
      %p98 = scmp.ne.s32.totalorder %s89, %s90
      %p99 = scmp.eq.s32.totalorder %s42, 0
      %p100 = por %p98, %p99
      %p101 = scmp.ne.s32.totalorder %s89, %s90
      %p102 = scmp.eq.s32.totalorder %s43, 1
      %p103 = por %p101, %p102
      %p105 = scmp.ne.s32.totalorder %s90, %s104
      %p106 = scmp.eq.s32.totalorder %s43, 0
      %p107 = por %p105, %p106
      %s109 = sadd.s32 %s108, 1
      %p112 = scmp.eq.s32.totalorder %s37, 1
      %p113 = scmp.ne.s32.totalorder %s108, %s110
      %p114 = scmp.eq.s32.totalorder %s37, 0
      %p115 = por %p113, %p114
      %p116 = scmp.ne.s32.totalorder %s108, %s110
      %p117 = scmp.eq.s32.totalorder %s42, 1
      %p118 = por %p116, %p117
      %p119 = scmp.ne.s32.totalorder %s110, %s111
      %p120 = scmp.eq.s32.totalorder %s42, 0
      %p121 = por %p119, %p120
      %p122 = scmp.ne.s32.totalorder %s110, %s111
      %p123 = scmp.eq.s32.totalorder %s43, 1
      %p124 = por %p122, %p123
      %p126 = scmp.ne.s32.totalorder %s111, %s125
      %p127 = scmp.eq.s32.totalorder %s43, 0
      %p128 = por %p126, %p127
      %s129 = ssub.s32 %s37, %s44
      %p130 = scmp.eq.s32.totalorder %s129, 0
      %s132 = sadd.s32 %s131, 1
      %s133 = scalar_select %p130, %s131, %s132
      %p136 = pneg %p130
      %p137 = scmp.eq.s32.totalorder %s37, 1
      %p138 = por %p136, %p137
      %p139 = scmp.ne.s32.totalorder %s131, %s134
      %p140 = scmp.eq.s32.totalorder %s37, 0
      %p141 = por %p139, %p140
      %p142 = scmp.ne.s32.totalorder %s131, %s134
      %p143 = scmp.eq.s32.totalorder %s42, 1
      %p144 = por %p142, %p143
      %p145 = scmp.ne.s32.totalorder %s134, %s135
      %p146 = scmp.eq.s32.totalorder %s42, 0
      %p147 = por %p145, %p146
      %p148 = scmp.ne.s32.totalorder %s134, %s135
      %p149 = scmp.eq.s32.totalorder %s43, 1
      %p150 = por %p148, %p149
      %p152 = scmp.ne.s32.totalorder %s135, %s151
      %p153 = scmp.eq.s32.totalorder %s43, 0
      %p154 = por %p152, %p153
      %s155 = ssub.s32 %s37, %s44
      %p156 = scmp.eq.s32.totalorder %s155, 0
      %s158 = sadd.s32 %s157, 1
      %s159 = scalar_select %p156, %s157, %s158
      %p162 = pneg %p156
      %p163 = scmp.eq.s32.totalorder %s37, 1
      %p164 = por %p162, %p163
      %p165 = scmp.ne.s32.totalorder %s157, %s160
      %p166 = scmp.eq.s32.totalorder %s37, 0
      %p167 = por %p165, %p166
      %p168 = scmp.ne.s32.totalorder %s157, %s160
      %p169 = scmp.eq.s32.totalorder %s42, 1
      %p170 = por %p168, %p169
      %p171 = scmp.ne.s32.totalorder %s160, %s161
      %p172 = scmp.eq.s32.totalorder %s42, 0
      %p173 = por %p171, %p172
      %p174 = scmp.ne.s32.totalorder %s160, %s161
      %p175 = scmp.eq.s32.totalorder %s43, 1
      %p176 = por %p174, %p175
      %p178 = scmp.ne.s32.totalorder %s161, %s177
      %p179 = scmp.eq.s32.totalorder %s43, 0
      %p180 = por %p178, %p179
      %s181 = ssub.s32 %s37, %s44
      %p182 = scmp.eq.s32.totalorder %s181, 0
      %s184 = sadd.s32 %s183, 1
      %s185 = scalar_select %p182, %s183, %s184
      %p188 = pneg %p182
      %p189 = scmp.eq.s32.totalorder %s37, 1
      %p190 = por %p188, %p189
      %p191 = scmp.ne.s32.totalorder %s183, %s186
      %p192 = scmp.eq.s32.totalorder %s37, 0
      %p193 = por %p191, %p192
      %p194 = scmp.ne.s32.totalorder %s183, %s186
      %p195 = scmp.eq.s32.totalorder %s42, 1
      %p196 = por %p194, %p195
      %p197 = scmp.ne.s32.totalorder %s186, %s187
      %p198 = scmp.eq.s32.totalorder %s42, 0
      %p199 = por %p197, %p198
      %p200 = scmp.ne.s32.totalorder %s186, %s187
      %p201 = scmp.eq.s32.totalorder %s43, 1
      %p202 = por %p200, %p201
      %p204 = scmp.ne.s32.totalorder %s187, %s203
      %p205 = scmp.eq.s32.totalorder %s43, 0
      %p206 = por %p204, %p205
      %s207 = ssub.s32 %s37, %s44
      %p208 = scmp.eq.s32.totalorder %s207, 0
      %s210 = sadd.s32 %s209, 1
      %s211 = scalar_select %p208, %s209, %s210
      %p214 = pneg %p208
      %p215 = scmp.eq.s32.totalorder %s37, 1
      %p216 = por %p214, %p215
      %p217 = scmp.ne.s32.totalorder %s209, %s212
      %p218 = scmp.eq.s32.totalorder %s37, 0
      %p219 = por %p217, %p218
      %p220 = scmp.ne.s32.totalorder %s209, %s212
      %p221 = scmp.eq.s32.totalorder %s42, 1
      %p222 = por %p220, %p221
      %p223 = scmp.ne.s32.totalorder %s212, %s213
      %p224 = scmp.eq.s32.totalorder %s42, 0
      %p225 = por %p223, %p224
      %p226 = scmp.ne.s32.totalorder %s212, %s213
      %p227 = scmp.eq.s32.totalorder %s43, 1
      %p228 = por %p226, %p227
      %p230 = scmp.ne.s32.totalorder %s213, %s229
      %p231 = scmp.eq.s32.totalorder %s43, 0
      %p232 = por %p230, %p231
      %s233 = ssub.s32 %s37, %s44
      %p234 = scmp.eq.s32.totalorder %s233, 0
      %s236 = sadd.s32 %s235, 1
      %s237 = scalar_select %p234, %s235, %s236
      %p240 = pneg %p234
      %p241 = scmp.eq.s32.totalorder %s37, 1
      %p242 = por %p240, %p241
      %p243 = scmp.ne.s32.totalorder %s235, %s238
      %p244 = scmp.eq.s32.totalorder %s37, 0
      %p245 = por %p243, %p244
      %p246 = scmp.ne.s32.totalorder %s235, %s238
      %p247 = scmp.eq.s32.totalorder %s42, 1
      %p248 = por %p246, %p247
      %p249 = scmp.ne.s32.totalorder %s238, %s239
      %p250 = scmp.eq.s32.totalorder %s42, 0
      %p251 = por %p249, %p250
      %p252 = scmp.ne.s32.totalorder %s238, %s239
      %p253 = scmp.eq.s32.totalorder %s43, 1
      %p254 = por %p252, %p253
      %p256 = scmp.ne.s32.totalorder %s239, %s255
      %p257 = scmp.eq.s32.totalorder %s43, 0
      %p258 = por %p256, %p257
      %s259 = ssub.s32 %s37, %s44
      %p260 = scmp.eq.s32.totalorder %s259, 0
      %s262 = sadd.s32 %s261, 1
      %s263 = scalar_select %p260, %s261, %s262
      %p266 = pneg %p260
      %p267 = scmp.eq.s32.totalorder %s37, 1
      %p268 = por %p266, %p267
      %p269 = scmp.ne.s32.totalorder %s261, %s264
      %p270 = scmp.eq.s32.totalorder %s37, 0
      %p271 = por %p269, %p270
      %p272 = scmp.ne.s32.totalorder %s261, %s264
      %p273 = scmp.eq.s32.totalorder %s42, 1
      %p274 = por %p272, %p273
      %p275 = scmp.ne.s32.totalorder %s264, %s265
      %p276 = scmp.eq.s32.totalorder %s42, 0
      %p277 = por %p275, %p276
      %p278 = scmp.ne.s32.totalorder %s264, %s265
      %p279 = scmp.eq.s32.totalorder %s43, 1
      %p280 = por %p278, %p279
      %p282 = scmp.ne.s32.totalorder %s265, %s281
      %p283 = scmp.eq.s32.totalorder %s43, 0
      %p284 = por %p282, %p283
      %s285 = ssub.s32 %s37, %s44
      %p286 = scmp.eq.s32.totalorder %s285, 0
      %s288 = sadd.s32 %s287, 1
      %s289 = scalar_select %p286, %s287, %s288
      %p292 = pneg %p286
      %p293 = scmp.eq.s32.totalorder %s37, 1
      %p294 = por %p292, %p293
      %p295 = scmp.ne.s32.totalorder %s287, %s290
      %p296 = scmp.eq.s32.totalorder %s37, 0
      %p297 = por %p295, %p296
      %p298 = scmp.ne.s32.totalorder %s287, %s290
      %p299 = scmp.eq.s32.totalorder %s42, 1
      %p300 = por %p298, %p299
      %p301 = scmp.ne.s32.totalorder %s290, %s291
      %p302 = scmp.eq.s32.totalorder %s42, 0
      %p303 = por %p301, %p302
      %p304 = scmp.ne.s32.totalorder %s290, %s291
      %p305 = scmp.eq.s32.totalorder %s43, 1
      %p306 = por %p304, %p305
      %p308 = scmp.ne.s32.totalorder %s291, %s307
      %p309 = scmp.eq.s32.totalorder %s43, 0
      %p310 = por %p308, %p309
      %s311 = ssub.s32 %s37, %s44
      %p312 = scmp.eq.s32.totalorder %s311, 0
      %s314 = sadd.s32 %s313, 1
      %s315 = scalar_select %p312, %s313, %s314
      %p318 = pneg %p312
      %p319 = scmp.eq.s32.totalorder %s37, 1
      %p320 = por %p318, %p319
      %p321 = scmp.ne.s32.totalorder %s313, %s316
      %p322 = scmp.eq.s32.totalorder %s37, 0
      %p323 = por %p321, %p322
      %p324 = scmp.ne.s32.totalorder %s313, %s316
      %p325 = scmp.eq.s32.totalorder %s42, 1
      %p326 = por %p324, %p325
      %p327 = scmp.ne.s32.totalorder %s316, %s317
      %p328 = scmp.eq.s32.totalorder %s42, 0
      %p329 = por %p327, %p328
      %p330 = scmp.ne.s32.totalorder %s316, %s317
      %p331 = scmp.eq.s32.totalorder %s43, 1
      %p332 = por %p330, %p331
      %p334 = scmp.ne.s32.totalorder %s317, %s333
      %p335 = scmp.eq.s32.totalorder %s43, 0
      %p336 = por %p334, %p335
      %s337 = ssub.s32 %s37, %s44
      %p338 = scmp.eq.s32.totalorder %s337, 0
      %s340 = sadd.s32 %s339, 1
      %s341 = scalar_select %p338, %s339, %s340
      %p344 = pneg %p338
      %p345 = scmp.eq.s32.totalorder %s37, 1
      %p346 = por %p344, %p345
      %p347 = scmp.ne.s32.totalorder %s339, %s342
      %p348 = scmp.eq.s32.totalorder %s37, 0
      %p349 = por %p347, %p348
      %p350 = scmp.ne.s32.totalorder %s339, %s342
      %p351 = scmp.eq.s32.totalorder %s42, 1
      %p352 = por %p350, %p351
      %p353 = scmp.ne.s32.totalorder %s342, %s343
      %p354 = scmp.eq.s32.totalorder %s42, 0
      %p355 = por %p353, %p354
      %p356 = scmp.ne.s32.totalorder %s342, %s343
      %p357 = scmp.eq.s32.totalorder %s43, 1
      %p358 = por %p356, %p357
      %p360 = scmp.ne.s32.totalorder %s343, %s359
      %p361 = scmp.eq.s32.totalorder %s43, 0
      %p362 = por %p360, %p361
      %s363 = ssub.s32 %s37, %s44
      %p364 = scmp.eq.s32.totalorder %s363, 0
      %s366 = sadd.s32 %s365, 1
      %s367 = scalar_select %p364, %s365, %s366
      %p370 = pneg %p364
      %p371 = scmp.eq.s32.totalorder %s37, 1
      %p372 = por %p370, %p371
      %p373 = scmp.ne.s32.totalorder %s365, %s368
      %p374 = scmp.eq.s32.totalorder %s37, 0
      %p375 = por %p373, %p374
      %p376 = scmp.ne.s32.totalorder %s365, %s368
      %p377 = scmp.eq.s32.totalorder %s42, 1
      %p378 = por %p376, %p377
      %p379 = scmp.ne.s32.totalorder %s368, %s369
      %p380 = scmp.eq.s32.totalorder %s42, 0
      %p381 = por %p379, %p380
      %p382 = scmp.ne.s32.totalorder %s368, %s369
      %p383 = scmp.eq.s32.totalorder %s43, 1
      %p384 = por %p382, %p383
      %p386 = scmp.ne.s32.totalorder %s369, %s385
      %p387 = scmp.eq.s32.totalorder %s43, 0
      %p388 = por %p386, %p387
      %s389 = ssub.s32 %s37, %s44
      %p390 = scmp.eq.s32.totalorder %s389, 0
      %s392 = sadd.s32 %s391, 1
      %s393 = scalar_select %p390, %s391, %s392
      %p396 = pneg %p390
      %p397 = scmp.eq.s32.totalorder %s37, 1
      %p398 = por %p396, %p397
      %p399 = scmp.ne.s32.totalorder %s391, %s394
      %p400 = scmp.eq.s32.totalorder %s37, 0
      %p401 = por %p399, %p400
      %p402 = scmp.ne.s32.totalorder %s391, %s394
      %p403 = scmp.eq.s32.totalorder %s42, 1
      %p404 = por %p402, %p403
      %p405 = scmp.ne.s32.totalorder %s394, %s395
      %p406 = scmp.eq.s32.totalorder %s42, 0
      %p407 = por %p405, %p406
      %p408 = scmp.ne.s32.totalorder %s394, %s395
      %p409 = scmp.eq.s32.totalorder %s43, 1
      %p410 = por %p408, %p409
      %p412 = scmp.ne.s32.totalorder %s395, %s411
      %p413 = scmp.eq.s32.totalorder %s43, 0
      %p414 = por %p412, %p413
      %s415 = ssub.s32 %s37, %s44
      %p416 = scmp.eq.s32.totalorder %s415, 0
      %s418 = sadd.s32 %s417, 1
      %s419 = scalar_select %p416, %s417, %s418
      %p422 = pneg %p416
      %p423 = scmp.eq.s32.totalorder %s37, 1
      %p424 = por %p422, %p423
      %p425 = scmp.ne.s32.totalorder %s417, %s420
      %p426 = scmp.eq.s32.totalorder %s37, 0
      %p427 = por %p425, %p426
      %p428 = scmp.ne.s32.totalorder %s417, %s420
      %p429 = scmp.eq.s32.totalorder %s42, 1
      %p430 = por %p428, %p429
      %p431 = scmp.ne.s32.totalorder %s420, %s421
      %p432 = scmp.eq.s32.totalorder %s42, 0
      %p433 = por %p431, %p432
      %p434 = scmp.ne.s32.totalorder %s420, %s421
      %p435 = scmp.eq.s32.totalorder %s43, 1
      %p436 = por %p434, %p435
      %p438 = scmp.ne.s32.totalorder %s421, %s437
      %p439 = scmp.eq.s32.totalorder %s43, 0
      %p440 = por %p438, %p439
      %s442 = sadd.s32 %s441, 1
      %p445 = scmp.eq.s32.totalorder %s37, 1
      %p446 = scmp.ne.s32.totalorder %s441, %s443
      %p447 = scmp.eq.s32.totalorder %s37, 0
      %p448 = por %p446, %p447
      %p449 = scmp.ne.s32.totalorder %s441, %s443
      %p450 = scmp.eq.s32.totalorder %s42, 1
      %p451 = por %p449, %p450
      %p452 = scmp.ne.s32.totalorder %s443, %s444
      %p453 = scmp.eq.s32.totalorder %s42, 0
      %p454 = por %p452, %p453
      %p455 = scmp.ne.s32.totalorder %s443, %s444
      %p456 = scmp.eq.s32.totalorder %s43, 1
      %p457 = por %p455, %p456
      %p459 = scmp.ne.s32.totalorder %s444, %s458
      %p460 = scmp.eq.s32.totalorder %s43, 0
      %p461 = por %p459, %p460
      %s463 = sadd.s32 %s462, 1
      %p466 = scmp.eq.s32.totalorder %s37, 1
      %p467 = scmp.ne.s32.totalorder %s462, %s464
      %p468 = scmp.eq.s32.totalorder %s37, 0
      %p469 = por %p467, %p468
      %p470 = scmp.ne.s32.totalorder %s462, %s464
      %p471 = scmp.eq.s32.totalorder %s42, 1
      %p472 = por %p470, %p471
      %p473 = scmp.ne.s32.totalorder %s464, %s465
      %p474 = scmp.eq.s32.totalorder %s42, 0
      %p475 = por %p473, %p474
      %p476 = scmp.ne.s32.totalorder %s464, %s465
      %p477 = scmp.eq.s32.totalorder %s43, 1
      %p478 = por %p476, %p477
      %p480 = scmp.ne.s32.totalorder %s465, %s479
      %p481 = scmp.eq.s32.totalorder %s43, 0
      %p482 = por %p480, %p481
      %s484 = sadd.s32 %s483, 1
      %p487 = scmp.eq.s32.totalorder %s37, 1
      %p488 = scmp.ne.s32.totalorder %s483, %s485
      %p489 = scmp.eq.s32.totalorder %s37, 0
      %p490 = por %p488, %p489
      %p491 = scmp.ne.s32.totalorder %s483, %s485
      %p492 = scmp.eq.s32.totalorder %s42, 1
      %p493 = por %p491, %p492
      %p494 = scmp.ne.s32.totalorder %s485, %s486
      %p495 = scmp.eq.s32.totalorder %s42, 0
      %p496 = por %p494, %p495
      %p497 = scmp.ne.s32.totalorder %s485, %s486
      %p498 = scmp.eq.s32.totalorder %s43, 1
      %p499 = por %p497, %p498
      %p501 = scmp.ne.s32.totalorder %s486, %s500
      %p502 = scmp.eq.s32.totalorder %s43, 0
      %p503 = por %p501, %p502
      %s505 = sadd.s32 %s504, 1
      %p508 = scmp.eq.s32.totalorder %s37, 1
      %p509 = scmp.ne.s32.totalorder %s504, %s506
      %p510 = scmp.eq.s32.totalorder %s37, 0
      %p511 = por %p509, %p510
      %p512 = scmp.ne.s32.totalorder %s504, %s506
      %p513 = scmp.eq.s32.totalorder %s42, 1
      %p514 = por %p512, %p513
      %p515 = scmp.ne.s32.totalorder %s506, %s507
      %p516 = scmp.eq.s32.totalorder %s42, 0
      %p517 = por %p515, %p516
      %p518 = scmp.ne.s32.totalorder %s506, %s507
      %p519 = scmp.eq.s32.totalorder %s43, 1
      %p520 = por %p518, %p519
      %p522 = scmp.ne.s32.totalorder %s507, %s521
      %p523 = scmp.eq.s32.totalorder %s43, 0
      %p524 = por %p522, %p523
      %p525 = scmp.le.s32.totalorder 1, %s37
      %p526 = scmp.lt.s32.totalorder %s37, 3
      %p527 = pnand %p525, %p526
      %p528 = pneg %p527
      // Predicated region
      $region9: #{tpu_custom_call.1} parent=5 // pred_check
        _
      $region10: #{tpu_custom_call.1} parent=5 // pred_check_branch
        %530 = sbr.rel (%p527) target = $region12
      $region11: #{tpu_custom_call.1} parent=5 // pred_region
        %s531 = ssub.s32 %s37, 1
        // Predicated region
        $region13: #{tpu_custom_call.1} parent=11 // pred_check
          %p532 = pneg %p58
        $region14: #{tpu_custom_call.1} parent=11 // pred_check_branch
          %534 = sbr.rel (%p532) target = $region16
        $region15: #{tpu_custom_call.1} parent=11 // pred_region
          %s536 = ssub.s32 256, 256
          %537 = vsyncadd [#allocation3], %s536
          %s538 = sshll.u32 [#allocation2], 4
          %s539 = int_to_ptr.vmem [resolvable:$true] %s538
          %544 = dma.hbm_to_vmem [thread:$0]  %s0, 256, %s539, [#allocation3], 128, 128, 8
        $region16: #{tpu_custom_call.1} parent=11 // pred_fallthru
          _
        // Predicated region
        $region17: #{tpu_custom_call.1} parent=11 // pred_check
          %p545 = pneg %p79
        $region18: #{tpu_custom_call.1} parent=11 // pred_check_branch
          %547 = sbr.rel (%p545) target = $region20
        $region19: #{tpu_custom_call.1} parent=11 // pred_region
          _
        $region20: #{tpu_custom_call.1} parent=11 // pred_fallthru
          _
        // Predicated region
        $region21: #{tpu_custom_call.1} parent=11 // pred_check
          %p548 = pneg %p100
        $region22: #{tpu_custom_call.1} parent=11 // pred_check_branch
          %550 = sbr.rel (%p548) target = $region24
        $region23: #{tpu_custom_call.1} parent=11 // pred_region
          %s552 = ssub.s32 16, 16
          %553 = vsyncadd [#allocation6], %s552
          %s555 = sshll.u32 [#allocation5], 4
          %s556 = int_to_ptr.vmem [resolvable:$true] %s555
          %558 = dma.hbm_to_vmem [thread:$0]  %s2, 16, %s556, [#allocation6]
        $region24: #{tpu_custom_call.1} parent=11 // pred_fallthru
          _
        // Predicated region
        $region25: #{tpu_custom_call.1} parent=11 // pred_check
          %p559 = pneg %p121
        $region26: #{tpu_custom_call.1} parent=11 // pred_check_branch
          %561 = sbr.rel (%p559) target = $region28
        $region27: #{tpu_custom_call.1} parent=11 // pred_region
          %s563 = ssub.s32 16, 16
          %564 = vsyncadd [#allocation6], %s563
          %s566 = sshll.u32 [#allocation7], 4
          %s567 = int_to_ptr.vmem [resolvable:$true] %s566
          %569 = dma.hbm_to_vmem [thread:$0]  %s3, 16, %s567, [#allocation6]
        $region28: #{tpu_custom_call.1} parent=11 // pred_fallthru
          _
        // Predicated region
        $region29: #{tpu_custom_call.1} parent=11 // pred_check
          %p570 = pneg %p454
        $region30: #{tpu_custom_call.1} parent=11 // pred_check_branch
          %572 = sbr.rel (%p570) target = $region32
        $region31: #{tpu_custom_call.1} parent=11 // pred_region
          %s574 = ssub.s32 1024, 1024
          %575 = vsyncadd [#allocation15], %s574
          %s576 = sshll.u32 [#allocation14], 4
          %s577 = int_to_ptr.vmem [resolvable:$true] %s576
          %582 = dma.hbm_to_vmem [thread:$0]  %s16, 1024, %s577, [#allocation15], 64, 64, 4
        $region32: #{tpu_custom_call.1} parent=11 // pred_fallthru
          _
        // Predicated region
        $region33: #{tpu_custom_call.1} parent=11 // pred_check
          %p583 = pneg %p475
        $region34: #{tpu_custom_call.1} parent=11 // pred_check_branch
          %585 = sbr.rel (%p583) target = $region36
        $region35: #{tpu_custom_call.1} parent=11 // pred_region
          _
        $region36: #{tpu_custom_call.1} parent=11 // pred_fallthru
          _
      $region12: #{tpu_custom_call.1} parent=5 // pred_fallthru
        _
      %p586 = scmp.lt.s32.totalorder %s37, 2
      // Predicated region
      $region37: #{tpu_custom_call.1} parent=5 // pred_check
        %p587 = pneg %p586
      $region38: #{tpu_custom_call.1} parent=5 // pred_check_branch
        %589 = sbr.rel (%p587) target = $region40
      $region39: #{tpu_custom_call.1} parent=5 // pred_region
        // Predicated region
        $region41: #{tpu_custom_call.1} parent=39 // pred_check
          %p590 = pneg %p141
        $region42: #{tpu_custom_call.1} parent=39 // pred_check_branch
          %592 = sbr.rel (%p590) target = $region44
        $region43: #{tpu_custom_call.1} parent=39 // pred_region
          %s593 = sand.u32 %s37, 1
          %s594 = scalar_lea.sflag [#allocation9], %s593
          %s595 = sand.u32 %s131, 1
          %s596 = smul.addr %s595, 192
          %s597 = scalar_lea.vmem [#allocation8], %s596
          %s599 = ssub.s32 3072, 3072
          %600 = vsyncadd %s594, %s599
          %s601 = smul.addr %s37, 48
          %s602 = smul.addr %s601, 64
          %s603 = scalar_lea.hbm %s4, %s602
          %s604 = sshll.u32 %s597, 4
          %s605 = int_to_ptr.vmem [resolvable:$true] %s604
          %610 = dma.hbm_to_vmem [thread:$0]  %s603, 3072, %s605, %s594, 192, 192, 12
        $region44: #{tpu_custom_call.1} parent=39 // pred_fallthru
          _
        // Predicated region
        $region45: #{tpu_custom_call.1} parent=39 // pred_check
          %p611 = pneg %p167
        $region46: #{tpu_custom_call.1} parent=39 // pred_check_branch
          %613 = sbr.rel (%p611) target = $region48
        $region47: #{tpu_custom_call.1} parent=39 // pred_region
          %p614 = scmp.lt.s32.totalorder %s37, 1
          %s615 = scalar_select %p614, %s37, 1
          %s616 = smul.addr %s615, 3
          %s617 = scalar_lea.vmem %s5, %s616
        $region48: #{tpu_custom_call.1} parent=39 // pred_fallthru
          _
        // Predicated region
        $region49: #{tpu_custom_call.1} parent=39 // pred_check
          %p618 = pneg %p193
        $region50: #{tpu_custom_call.1} parent=39 // pred_check_branch
          %620 = sbr.rel (%p618) target = $region52
        $region51: #{tpu_custom_call.1} parent=39 // pred_region
          %s621 = sand.u32 %s37, 1
          %s622 = scalar_lea.sflag [#allocation9], %s621
          %s623 = sand.u32 %s183, 1
          %s624 = smul.addr %s623, 64
          %s625 = scalar_lea.vmem [#allocation10], %s624
          %s627 = ssub.s32 1024, 1024
          %628 = vsyncadd %s622, %s627
          %s629 = smul.addr %s37, 16
          %s630 = smul.addr %s629, 64
          %s631 = scalar_lea.hbm %s6, %s630
          %s632 = sshll.u32 %s625, 4
          %s633 = int_to_ptr.vmem [resolvable:$true] %s632
          %638 = dma.hbm_to_vmem [thread:$0]  %s631, 1024, %s633, %s622, 64, 64, 4
        $region52: #{tpu_custom_call.1} parent=39 // pred_fallthru
          _
        // Predicated region
        $region53: #{tpu_custom_call.1} parent=39 // pred_check
          %p639 = pneg %p219
        $region54: #{tpu_custom_call.1} parent=39 // pred_check_branch
          %641 = sbr.rel (%p639) target = $region56
        $region55: #{tpu_custom_call.1} parent=39 // pred_region
          %p642 = scmp.lt.s32.totalorder %s37, 1
          %s643 = scalar_select %p642, %s37, 1
          %s644 = scalar_lea.vmem %s7, %s643
        $region56: #{tpu_custom_call.1} parent=39 // pred_fallthru
          _
        // Predicated region
        $region57: #{tpu_custom_call.1} parent=39 // pred_check
          %p645 = pneg %p245
        $region58: #{tpu_custom_call.1} parent=39 // pred_check_branch
          %647 = sbr.rel (%p645) target = $region60
        $region59: #{tpu_custom_call.1} parent=39 // pred_region
          %p648 = scmp.lt.s32.totalorder %s37, 1
          %s649 = scalar_select %p648, %s37, 1
          %s650 = scalar_lea.vmem %s8, %s649
        $region60: #{tpu_custom_call.1} parent=39 // pred_fallthru
          _
        // Predicated region
        $region61: #{tpu_custom_call.1} parent=39 // pred_check
          %p651 = pneg %p271
        $region62: #{tpu_custom_call.1} parent=39 // pred_check_branch
          %653 = sbr.rel (%p651) target = $region64
        $region63: #{tpu_custom_call.1} parent=39 // pred_region
          %p654 = scmp.lt.s32.totalorder %s37, 1
          %s655 = scalar_select %p654, %s37, 1
          %s656 = scalar_lea.vmem %s9, %s655
        $region64: #{tpu_custom_call.1} parent=39 // pred_fallthru
          _
        // Predicated region
        $region65: #{tpu_custom_call.1} parent=39 // pred_check
          %p657 = pneg %p297
        $region66: #{tpu_custom_call.1} parent=39 // pred_check_branch
          %659 = sbr.rel (%p657) target = $region68
        $region67: #{tpu_custom_call.1} parent=39 // pred_region
          %s660 = sand.u32 %s37, 1
          %s661 = scalar_lea.sflag [#allocation12], %s660
          %s662 = sand.u32 %s287, 1
          %s663 = smul.addr %s662, 64
          %s664 = scalar_lea.vmem [#allocation11], %s663
          %s666 = ssub.s32 1024, 1024
          %667 = vsyncadd %s661, %s666
          %s668 = smul.addr %s37, 16
          %s669 = smul.addr %s668, 64
          %s670 = scalar_lea.hbm %s10, %s669
          %s671 = sshll.u32 %s664, 4
          %s672 = int_to_ptr.vmem [resolvable:$true] %s671
          %677 = dma.hbm_to_vmem [thread:$0]  %s670, 1024, %s672, %s661, 64, 64, 4
        $region68: #{tpu_custom_call.1} parent=39 // pred_fallthru
          _
        // Predicated region
        $region69: #{tpu_custom_call.1} parent=39 // pred_check
          %p678 = pneg %p323
        $region70: #{tpu_custom_call.1} parent=39 // pred_check_branch
          %680 = sbr.rel (%p678) target = $region72
        $region71: #{tpu_custom_call.1} parent=39 // pred_region
          %p681 = scmp.lt.s32.totalorder %s37, 1
          %s682 = scalar_select %p681, %s37, 1
          %s683 = scalar_lea.vmem %s11, %s682
        $region72: #{tpu_custom_call.1} parent=39 // pred_fallthru
          _
        // Predicated region
        $region73: #{tpu_custom_call.1} parent=39 // pred_check
          %p684 = pneg %p349
        $region74: #{tpu_custom_call.1} parent=39 // pred_check_branch
          %686 = sbr.rel (%p684) target = $region76
        $region75: #{tpu_custom_call.1} parent=39 // pred_region
          %s687 = sand.u32 %s37, 1
          %s688 = scalar_lea.sflag [#allocation12], %s687
          %s689 = sand.u32 %s339, 1
          %s690 = smul.addr %s689, 64
          %s691 = scalar_lea.vmem [#allocation13], %s690
          %s693 = ssub.s32 1024, 1024
          %694 = vsyncadd %s688, %s693
          %s695 = smul.addr %s37, 16
          %s696 = smul.addr %s695, 64
          %s697 = scalar_lea.hbm %s12, %s696
          %s698 = sshll.u32 %s691, 4
          %s699 = int_to_ptr.vmem [resolvable:$true] %s698
          %704 = dma.hbm_to_vmem [thread:$0]  %s697, 1024, %s699, %s688, 64, 64, 4
        $region76: #{tpu_custom_call.1} parent=39 // pred_fallthru
          _
        // Predicated region
        $region77: #{tpu_custom_call.1} parent=39 // pred_check
          %p705 = pneg %p375
        $region78: #{tpu_custom_call.1} parent=39 // pred_check_branch
          %707 = sbr.rel (%p705) target = $region80
        $region79: #{tpu_custom_call.1} parent=39 // pred_region
          %p708 = scmp.lt.s32.totalorder %s37, 1
          %s709 = scalar_select %p708, %s37, 1
          %s710 = scalar_lea.vmem %s13, %s709
        $region80: #{tpu_custom_call.1} parent=39 // pred_fallthru
          _
        // Predicated region
        $region81: #{tpu_custom_call.1} parent=39 // pred_check
          %p711 = pneg %p401
        $region82: #{tpu_custom_call.1} parent=39 // pred_check_branch
          %713 = sbr.rel (%p711) target = $region84
        $region83: #{tpu_custom_call.1} parent=39 // pred_region
          %p714 = scmp.lt.s32.totalorder %s37, 1
          %s715 = scalar_select %p714, %s37, 1
          %s716 = scalar_lea.vmem %s14, %s715
        $region84: #{tpu_custom_call.1} parent=39 // pred_fallthru
          _
        // Predicated region
        $region85: #{tpu_custom_call.1} parent=39 // pred_check
          %p717 = pneg %p427
        $region86: #{tpu_custom_call.1} parent=39 // pred_check_branch
          %719 = sbr.rel (%p717) target = $region88
        $region87: #{tpu_custom_call.1} parent=39 // pred_region
          %p720 = scmp.lt.s32.totalorder %s37, 1
          %s721 = scalar_select %p720, %s37, 1
          %s722 = scalar_lea.vmem %s15, %s721
        $region88: #{tpu_custom_call.1} parent=39 // pred_fallthru
          _
      $region40: #{tpu_custom_call.1} parent=5 // pred_fallthru
        _
      %p723 = scmp.le.s32.totalorder 1, %s37
      %p724 = scmp.lt.s32.totalorder %s37, 3
      %p725 = pnand %p723, %p724
      %p726 = pneg %p725
      // Predicated region
      $region89: #{tpu_custom_call.1} parent=5 // pred_check
        _
      $region90: #{tpu_custom_call.1} parent=5 // pred_check_branch
        %728 = sbr.rel (%p725) target = $region92
      $region91: #{tpu_custom_call.1} parent=5 // pred_region
        %s729 = ssub.s32 %s37, 1
        // Predicated region
        $region93: #{tpu_custom_call.1} parent=91 // pred_check
          %p730 = pneg %p58
        $region94: #{tpu_custom_call.1} parent=91 // pred_check_branch
          %732 = sbr.rel (%p730) target = $region96
        $region95: #{tpu_custom_call.1} parent=91 // pred_region
          %733 = dma.done [#allocation3], 256
        $region96: #{tpu_custom_call.1} parent=91 // pred_fallthru
          _
        // Predicated region
        $region97: #{tpu_custom_call.1} parent=91 // pred_check
          %p734 = pneg %p100
        $region98: #{tpu_custom_call.1} parent=91 // pred_check_branch
          %736 = sbr.rel (%p734) target = $region100
        $region99: #{tpu_custom_call.1} parent=91 // pred_region
          %737 = dma.done [#allocation6], 16
        $region100: #{tpu_custom_call.1} parent=91 // pred_fallthru
          _
        // Predicated region
        $region101: #{tpu_custom_call.1} parent=91 // pred_check
          %p738 = pneg %p121
        $region102: #{tpu_custom_call.1} parent=91 // pred_check_branch
          %740 = sbr.rel (%p738) target = $region104
        $region103: #{tpu_custom_call.1} parent=91 // pred_region
          %741 = dma.done [#allocation6], 16
        $region104: #{tpu_custom_call.1} parent=91 // pred_fallthru
          _
        %s742 = sand.u32 %s42, 1
        %s743 = scalar_lea.sflag [#allocation9], %s742
        %s744 = sand.u32 %s134, 1
        %s745 = smul.addr %s744, 192
        %s746 = scalar_lea.vmem [#allocation8], %s745
        // Predicated region
        $region105: #{tpu_custom_call.1} parent=91 // pred_check
          %p747 = pneg %p147
        $region106: #{tpu_custom_call.1} parent=91 // pred_check_branch
          %749 = sbr.rel (%p747) target = $region108
        $region107: #{tpu_custom_call.1} parent=91 // pred_region
          %750 = dma.done %s743, 3072
        $region108: #{tpu_custom_call.1} parent=91 // pred_fallthru
          _
        %s751 = sand.u32 %s42, 1
        %s752 = scalar_lea.sflag [#allocation9], %s751
        %s753 = sand.u32 %s186, 1
        %s754 = smul.addr %s753, 64
        %s755 = scalar_lea.vmem [#allocation10], %s754
        // Predicated region
        $region109: #{tpu_custom_call.1} parent=91 // pred_check
          %p756 = pneg %p199
        $region110: #{tpu_custom_call.1} parent=91 // pred_check_branch
          %758 = sbr.rel (%p756) target = $region112
        $region111: #{tpu_custom_call.1} parent=91 // pred_region
          %759 = dma.done %s752, 1024
        $region112: #{tpu_custom_call.1} parent=91 // pred_fallthru
          _
        %s760 = sand.u32 %s42, 1
        %s761 = scalar_lea.sflag [#allocation12], %s760
        %s762 = sand.u32 %s290, 1
        %s763 = smul.addr %s762, 64
        %s764 = scalar_lea.vmem [#allocation11], %s763
        // Predicated region
        $region113: #{tpu_custom_call.1} parent=91 // pred_check
          %p765 = pneg %p303
        $region114: #{tpu_custom_call.1} parent=91 // pred_check_branch
          %767 = sbr.rel (%p765) target = $region116
        $region115: #{tpu_custom_call.1} parent=91 // pred_region
          %768 = dma.done %s761, 1024
        $region116: #{tpu_custom_call.1} parent=91 // pred_fallthru
          _
        %s769 = sand.u32 %s42, 1
        %s770 = scalar_lea.sflag [#allocation12], %s769
        %s771 = sand.u32 %s342, 1
        %s772 = smul.addr %s771, 64
        %s773 = scalar_lea.vmem [#allocation13], %s772
        // Predicated region
        $region117: #{tpu_custom_call.1} parent=91 // pred_check
          %p774 = pneg %p355
        $region118: #{tpu_custom_call.1} parent=91 // pred_check_branch
          %776 = sbr.rel (%p774) target = $region120
        $region119: #{tpu_custom_call.1} parent=91 // pred_region
          %777 = dma.done %s770, 1024
        $region120: #{tpu_custom_call.1} parent=91 // pred_fallthru
          _
        // Predicated region
        $region121: #{tpu_custom_call.1} parent=91 // pred_check
          %p778 = pneg %p454
        $region122: #{tpu_custom_call.1} parent=91 // pred_check_branch
          %780 = sbr.rel (%p778) target = $region124
        $region123: #{tpu_custom_call.1} parent=91 // pred_region
          %781 = dma.done [#allocation15], 1024
        $region124: #{tpu_custom_call.1} parent=91 // pred_fallthru
          _
        %p782 = pneg %p58
        %p783 = pneg %p55
        %p784 = pneg %p79
        %p785 = pneg %p76
        %p786 = pneg %p100
        %p787 = pneg %p97
        %p788 = pneg %p121
        %p789 = pneg %p118
        %s790 = sand.u32 %s42, 1
        %s791 = scalar_lea.sflag [#allocation9], %s790
        %s792 = sand.u32 %s134, 1
        %s793 = smul.addr %s792, 192
        %s794 = scalar_lea.vmem [#allocation8], %s793
        %p795 = pneg %p147
        %p796 = pneg %p144
        %p797 = scmp.lt.s32.totalorder %s42, 1
        %s798 = scalar_select %p797, %s42, 1
        %s799 = smul.addr %s798, 3
        %s800 = scalar_lea.vmem %s5, %s799
        %p801 = pneg %p173
        %p802 = pneg %p170
        %s803 = sand.u32 %s42, 1
        %s804 = scalar_lea.sflag [#allocation9], %s803
        %s805 = sand.u32 %s186, 1
        %s806 = smul.addr %s805, 64
        %s807 = scalar_lea.vmem [#allocation10], %s806
        %p808 = pneg %p199
        %p809 = pneg %p196
        %p810 = scmp.lt.s32.totalorder %s42, 1
        %s811 = scalar_select %p810, %s42, 1
        %s812 = scalar_lea.vmem %s7, %s811
        %p813 = pneg %p225
        %p814 = pneg %p222
        %p815 = scmp.lt.s32.totalorder %s42, 1
        %s816 = scalar_select %p815, %s42, 1
        %s817 = scalar_lea.vmem %s8, %s816
        %p818 = pneg %p251
        %p819 = pneg %p248
        %p820 = scmp.lt.s32.totalorder %s42, 1
        %s821 = scalar_select %p820, %s42, 1
        %s822 = scalar_lea.vmem %s9, %s821
        %p823 = pneg %p277
        %p824 = pneg %p274
        %s825 = sand.u32 %s42, 1
        %s826 = scalar_lea.sflag [#allocation12], %s825
        %s827 = sand.u32 %s290, 1
        %s828 = smul.addr %s827, 64
        %s829 = scalar_lea.vmem [#allocation11], %s828
        %p830 = pneg %p303
        %p831 = pneg %p300
        %p832 = scmp.lt.s32.totalorder %s42, 1
        %s833 = scalar_select %p832, %s42, 1
        %s834 = scalar_lea.vmem %s11, %s833
        %p835 = pneg %p329
        %p836 = pneg %p326
        %s837 = sand.u32 %s42, 1
        %s838 = scalar_lea.sflag [#allocation12], %s837
        %s839 = sand.u32 %s342, 1
        %s840 = smul.addr %s839, 64
        %s841 = scalar_lea.vmem [#allocation13], %s840
        %p842 = pneg %p355
        %p843 = pneg %p352
        %p844 = scmp.lt.s32.totalorder %s42, 1
        %s845 = scalar_select %p844, %s42, 1
        %s846 = scalar_lea.vmem %s13, %s845
        %p847 = pneg %p381
        %p848 = pneg %p378
        %p849 = scmp.lt.s32.totalorder %s42, 1
        %s850 = scalar_select %p849, %s42, 1
        %s851 = scalar_lea.vmem %s14, %s850
        %p852 = pneg %p407
        %p853 = pneg %p404
        %p854 = scmp.lt.s32.totalorder %s42, 1
        %s855 = scalar_select %p854, %s42, 1
        %s856 = scalar_lea.vmem %s15, %s855
        %p857 = pneg %p433
        %p858 = pneg %p430
        %p859 = pneg %p454
        %p860 = pneg %p451
        %p861 = pneg %p475
        %p862 = pneg %p472
        %p863 = pneg %p496
        %p864 = pneg %p493
        %p865 = pneg %p517
        %p866 = pneg %p514
        %p867 = scmp.lt.s32.totalorder %s42, 1
        %s868 = scalar_select %p867, %s42, 1
        %s869 = smul.addr %s868, 3
        %s870 = scalar_lea.vmem %s5, %s869
        %p871 = scmp.lt.s32.totalorder %s42, 1
        %s872 = scalar_select %p871, %s42, 1
        %s873 = scalar_lea.vmem %s7, %s872
        %p874 = scmp.lt.s32.totalorder %s42, 1
        %s875 = scalar_select %p874, %s42, 1
        %s876 = scalar_lea.vmem %s8, %s875
        %p877 = scmp.lt.s32.totalorder %s42, 1
        %s878 = scalar_select %p877, %s42, 1
        %s879 = scalar_lea.vmem %s9, %s878
        %p880 = scmp.lt.s32.totalorder %s42, 1
        %s881 = scalar_select %p880, %s42, 1
        %s882 = scalar_lea.vmem %s11, %s881
        %p883 = scmp.lt.s32.totalorder %s42, 1
        %s884 = scalar_select %p883, %s42, 1
        %s885 = scalar_lea.vmem %s13, %s884
        %p886 = scmp.lt.s32.totalorder %s42, 1
        %s887 = scalar_select %p886, %s42, 1
        %s888 = scalar_lea.vmem %s14, %s887
        %p889 = scmp.lt.s32.totalorder %s42, 1
        %s890 = scalar_select %p889, %s42, 1
        %s891 = scalar_lea.vmem %s15, %s890
        %p893 = scmp.eq.s32.totalorder %s42, 0
        // Predicated region
        $region125: #{tpu_custom_call.1} parent=91 // pred_check
          %p894 = pneg %p893
        $region126: #{tpu_custom_call.1} parent=91 // pred_check_branch
          %896 = sbr.rel (%p894) target = $region128
        $region127: #{tpu_custom_call.1} parent=91 // pred_region
          %v897 = vld [vmem:[#allocation2] sm:$0xff]
          %v898 = vld [vmem:[#allocation2 + $0x8] sm:$0xff]
          %v899 = vld [vmem:[#allocation5] sm:$0x1]
          %v900 = vld [vmem:[#allocation7] sm:$0x1]
          %901 = vadd.xlane.f32.xlu0 %v897
          %v902 = vpop.xlane.xlu0 %901
          %903 = vadd.xlane.f32.xlu0 %v898
          %v904 = vpop.xlane.xlu0 %903
          %v905 = vmul.f32 %v902, 0.03125
          %v906 = vmul.f32 %v904, 0.03125
          %v907 = vlaneseq
          %v908 = vand.u32 %v907, 127
          %vm909 = vcmp.lt.s32.totalorder %v908, 32
          %v910 = vsub.f32 %v897, %v905
          %v911 = vsub.f32 %v898, %v906
          %v912 = vsel %vm909, %v910, 0.0
          %v913 = vsel %vm909, %v911, 0.0
          %v914 = vmul.f32 %v912, %v912
          %v915 = vmul.f32 %v913, %v913
          %916 = vadd.xlane.f32.xlu0 %v914
          %v917 = vpop.xlane.xlu0 %916
          %918 = vadd.xlane.f32.xlu0 %v915
          %v919 = vpop.xlane.xlu0 %918
          %v920 = vmul.f32 %v917, 0.03125
          %v921 = vmul.f32 %v919, 0.03125
          %v922 = vadd.f32 %v920, 1e-12
          %v923 = vadd.f32 %v921, 1e-12
          %v924 = vrsqrt.pop %v922
          %v925 = vrsqrt.pop %v923
          %v926 = vmul.f32 %v912, %v924
          %v927 = vmul.f32 %v913, %v925
          %v929 = vlaneseq
          %v930 = vshrl.u32 %v929, 7
          %v931 = vsub.s32 0, %v930
          %v932 = vrot.slane %v899, %v931
          %v934 = vmul.f32 %v926, %v932
          %v935 = vmul.f32 %v927, %v932
          %v937 = vlaneseq
          %v938 = vshrl.u32 %v937, 7
          %v939 = vsub.s32 0, %v938
          %v940 = vrot.slane %v900, %v939
          %v942 = vadd.f32 %v934, %v940
          %v943 = vadd.f32 %v935, %v940
          %944 = vst [vmem:[#allocation16] sm:$0xff] %v942
          %945 = vst [vmem:[#allocation16 + $0x8] sm:$0xff] %v943
        $region128: #{tpu_custom_call.1} parent=91 // pred_fallthru
          _
        %v946 = vld [vmem:[#allocation16] sm:$0xff]
        %v947 = vld [vmem:[#allocation16 + $0x8] sm:$0xff]
        %v948 = vpack.c.bf16 %v947, %v946
        %v949 = vld [vmem:[%s746] sm:$0xff]
        %v950 = vld [vmem:[%s746 + $0x8] sm:$0xf]
        %v951 = vld [vmem:[%s746 + $0xc] sm:$0xff]
        %v952 = vld [vmem:[%s746 + $0x14] sm:$0xf]
        %v953 = vld [vmem:[%s746 + $0x18] sm:$0xff]
        %v954 = vld [vmem:[%s746 + $0x20] sm:$0xf]
        %v955 = vld [vmem:[%s746 + $0x24] sm:$0xff]
        %v956 = vld [vmem:[%s746 + $0x2c] sm:$0xf]
        %v957 = vld [vmem:[%s746 + $0x30] sm:$0xff]
        %v958 = vld [vmem:[%s746 + $0x38] sm:$0xf]
        %v959 = vld [vmem:[%s746 + $0x3c] sm:$0xff]
        %v960 = vld [vmem:[%s746 + $0x44] sm:$0xf]
        %v961 = vld [vmem:[%s746 + $0x48] sm:$0xff]
        %v962 = vld [vmem:[%s746 + $0x50] sm:$0xf]
        %v963 = vld [vmem:[%s746 + $0x54] sm:$0xff]
        %v964 = vld [vmem:[%s746 + $0x5c] sm:$0xf]
        %v965 = vld [vmem:[%s746 + $0x60] sm:$0xff]
        %v966 = vld [vmem:[%s746 + $0x68] sm:$0xf]
        %v967 = vld [vmem:[%s746 + $0x6c] sm:$0xff]
        %v968 = vld [vmem:[%s746 + $0x74] sm:$0xf]
        %v969 = vld [vmem:[%s746 + $0x78] sm:$0xff]
        %v970 = vld [vmem:[%s746 + $0x80] sm:$0xf]
        %v971 = vld [vmem:[%s746 + $0x84] sm:$0xff]
        %v972 = vld [vmem:[%s746 + $0x8c] sm:$0xf]
        %v973 = vld [vmem:[%s746 + $0x90] sm:$0xff]
        %v974 = vld [vmem:[%s746 + $0x98] sm:$0xf]
        %v975 = vld [vmem:[%s746 + $0x9c] sm:$0xff]
        %v976 = vld [vmem:[%s746 + $0xa4] sm:$0xf]
        %v977 = vld [vmem:[%s746 + $0xa8] sm:$0xff]
        %v978 = vld [vmem:[%s746 + $0xb0] sm:$0xf]
        %v979 = vld [vmem:[%s746 + $0xb4] sm:$0xff]
        %v980 = vld [vmem:[%s746 + $0xbc] sm:$0xf]
        %v981 = vld [vmem:[%s870] sm:$0x7]
        %v983 = vlaneseq
        %v984 = vshrl.u32 %v983, 7
        %v985 = vsub.s32 0, %v984
        %v986 = vrot.slane %v981, %v985
        %v987 = vlaneseq
        %v988 = vshrl.u32 %v987, 7
        %v989 = vsub.s32 1, %v988
        %v990 = vrot.slane %v981, %v989
        %v991 = vlaneseq
        %v992 = vshrl.u32 %v991, 7
        %v993 = vsub.s32 2, %v992
        %v994 = vrot.slane %v981, %v993
        %v1030 = vunpack.c.l.b16 %v949
        %v1031 = vunpack.c.h.b16 %v949
        %v1032 = vunpack.c.l.b16 %v950
        %v1033 = vunpack.c.l.b16 %v951
        %v1034 = vunpack.c.h.b16 %v951
        %v1035 = vunpack.c.l.b16 %v952
        %v1036 = vunpack.c.l.b16 %v953
        %v1037 = vunpack.c.h.b16 %v953
        %v1038 = vunpack.c.l.b16 %v954
        %v1039 = vunpack.c.l.b16 %v955
        %v1040 = vunpack.c.h.b16 %v955
        %v1041 = vunpack.c.l.b16 %v956
        %v1042 = vunpack.c.l.b16 %v957
        %v1043 = vunpack.c.h.b16 %v957
        %v1044 = vunpack.c.l.b16 %v958
        %v1045 = vunpack.c.l.b16 %v959
        %v1046 = vunpack.c.h.b16 %v959
        %v1047 = vunpack.c.l.b16 %v960
        %v1048 = vunpack.c.l.b16 %v961
        %v1049 = vunpack.c.h.b16 %v961
        %v1050 = vunpack.c.l.b16 %v962
        %v1051 = vunpack.c.l.b16 %v963
        %v1052 = vunpack.c.h.b16 %v963
        %v1053 = vunpack.c.l.b16 %v964
        %v1054 = vunpack.c.l.b16 %v965
        %v1055 = vunpack.c.h.b16 %v965
        %v1056 = vunpack.c.l.b16 %v966
        %v1057 = vunpack.c.l.b16 %v967
        %v1058 = vunpack.c.h.b16 %v967
        %v1059 = vunpack.c.l.b16 %v968
        %v1060 = vunpack.c.l.b16 %v969
        %v1061 = vunpack.c.h.b16 %v969
        %v1062 = vunpack.c.l.b16 %v970
        %v1063 = vunpack.c.l.b16 %v971
        %v1064 = vunpack.c.h.b16 %v971
        %v1065 = vunpack.c.l.b16 %v972
        %v1066 = vunpack.c.l.b16 %v973
        %v1067 = vunpack.c.h.b16 %v973
        %v1068 = vunpack.c.l.b16 %v974
        %v1069 = vunpack.c.l.b16 %v975
        %v1070 = vunpack.c.h.b16 %v975
        %v1071 = vunpack.c.l.b16 %v976
        %v1072 = vunpack.c.l.b16 %v977
        %v1073 = vunpack.c.h.b16 %v977
        %v1074 = vunpack.c.l.b16 %v978
        %v1075 = vunpack.c.l.b16 %v979
        %v1076 = vunpack.c.h.b16 %v979
        %v1077 = vunpack.c.l.b16 %v980
        %v1078 = vpack.c.b16 %v1033, %v1030
        %v1079 = vpack.c.b16 %v1034, %v1031
        %v1080 = vpack.c.b16 %v1035, %v1032
        %v1081 = vpack.c.b16 %v1039, %v1036
        %v1082 = vpack.c.b16 %v1040, %v1037
        %v1083 = vpack.c.b16 %v1041, %v1038
        %v1084 = vpack.c.b16 %v1045, %v1042
        %v1085 = vpack.c.b16 %v1046, %v1043
        %v1086 = vpack.c.b16 %v1047, %v1044
        %v1087 = vpack.c.b16 %v1051, %v1048
        %v1088 = vpack.c.b16 %v1052, %v1049
        %v1089 = vpack.c.b16 %v1053, %v1050
        %v1090 = vpack.c.b16 %v1057, %v1054
        %v1091 = vpack.c.b16 %v1058, %v1055
        %v1092 = vpack.c.b16 %v1059, %v1056
        %v1093 = vpack.c.b16 %v1063, %v1060
        %v1094 = vpack.c.b16 %v1064, %v1061
        %v1095 = vpack.c.b16 %v1065, %v1062
        %v1096 = vpack.c.b16 %v1069, %v1066
        %v1097 = vpack.c.b16 %v1070, %v1067
        %v1098 = vpack.c.b16 %v1071, %v1068
        %v1099 = vpack.c.b16 %v1075, %v1072
        %v1100 = vpack.c.b16 %v1076, %v1073
        %v1101 = vpack.c.b16 %v1077, %v1074
        %1126 = vmatprep.subr.bf16.mxu0 %v1079
        %1127 = vmatpush1.bf16.msra.mxu0 %v1078
        %1128 = vmatprep.subr.bf16.mxu0 %v1082
        %1129 = vmatpush1.bf16.msra.mxu0 %v1081
        %1130 = vmatprep.subr.bf16.mxu0 %v1085
        %1131 = vmatpush1.bf16.msra.mxu0 %v1084
        %1132 = vmatprep.subr.bf16.mxu0 %v1088
        %1133 = vmatpush1.bf16.msra.mxu0 %v1087
        %1134 = vmatprep.subr.bf16.mxu0 %v1091
        %1135 = vmatpush1.bf16.msra.mxu0 %v1090
        %1136 = vmatprep.subr.bf16.mxu0 %v1094
        %1137 = vmatpush1.bf16.msra.mxu0 %v1093
        %1138 = vmatprep.subr.bf16.mxu0 %v1097
        %1139 = vmatpush1.bf16.msra.mxu0 %v1096
        %1140 = vmatprep.subr.bf16.mxu0 %v1100
        %1141 = vmatpush1.bf16.msra.mxu0 %v1099
        %1142 = vmatprep.subr.bf16.mxu0 0
        %1143 = vmatpush1.bf16.msra.mxu0 0
        %1144 = vmatprep.subr.bf16.mxu0 0
        %1145 = vmatpush1.bf16.msra.mxu0 0
        %1146 = vmatprep.subr.bf16.mxu0 0
        %1147 = vmatpush1.bf16.msra.mxu0 0
        %1148 = vmatprep.subr.bf16.mxu0 0
        %1149 = vmatpush1.bf16.msra.mxu0 0
        %1150 = vmatprep.subr.bf16.mxu0 0
        %1151 = vmatpush1.bf16.msra.mxu0 0
        %1152 = vmatprep.subr.bf16.mxu0 0
        %1153 = vmatpush1.bf16.msra.mxu0 0
        %1154 = vmatprep.subr.bf16.mxu0 0
        %1155 = vmatpush1.bf16.msra.mxu0 0
        %1156 = vmatprep.subr.bf16.mxu0 0
        %1157 = vmatpush1.bf16.msra.mxu0 0
        %1158 = vmatprep.mubr.bf16.mxu0 0
        %1159 = vmatmul.mubr.bf16.gmra.mrb[0].mxu0 %v948
        %v1160 = vpop.f32.mrb[0].mxu0
        %v1161 = vadd.f32 %v986, %v1160
        %v1162 = vpop.f32.mrb[0].mxu0
        %v1163 = vadd.f32 %v990, %v1162
        %v1164 = vpop.f32.mrb[0].mxu0
        %v1165 = vadd.f32 %v986, %v1164
        %v1166 = vpop.f32.mrb[0].mxu0
        %v1167 = vadd.f32 %v990, %v1166
        %1168 = vdwg.mxu0
        %1169 = vmatprep.subr.bf16.mxu0 0
        %1170 = vmatpush1.bf16.msra.mxu0 %v1080
        %1171 = vmatprep.subr.bf16.mxu0 0
        %1172 = vmatpush1.bf16.msra.mxu0 %v1083
        %1173 = vmatprep.subr.bf16.mxu0 0
        %1174 = vmatpush1.bf16.msra.mxu0 %v1086
        %1175 = vmatprep.subr.bf16.mxu0 0
        %1176 = vmatpush1.bf16.msra.mxu0 %v1089
        %1177 = vmatprep.subr.bf16.mxu0 0
        %1178 = vmatpush1.bf16.msra.mxu0 %v1092
        %1179 = vmatprep.subr.bf16.mxu0 0
        %1180 = vmatpush1.bf16.msra.mxu0 %v1095
        %1181 = vmatprep.subr.bf16.mxu0 0
        %1182 = vmatpush1.bf16.msra.mxu0 %v1098
        %1183 = vmatprep.subr.bf16.mxu0 0
        %1184 = vmatpush1.bf16.msra.mxu0 %v1101
        %1185 = vmatprep.subr.bf16.mxu0 0
        %1186 = vmatpush1.bf16.msra.mxu0 0
        %1187 = vmatprep.subr.bf16.mxu0 0
        %1188 = vmatpush1.bf16.msra.mxu0 0
        %1189 = vmatprep.subr.bf16.mxu0 0
        %1190 = vmatpush1.bf16.msra.mxu0 0
        %1191 = vmatprep.subr.bf16.mxu0 0
        %1192 = vmatpush1.bf16.msra.mxu0 0
        %1193 = vmatprep.subr.bf16.mxu0 0
        %1194 = vmatpush1.bf16.msra.mxu0 0
        %1195 = vmatprep.subr.bf16.mxu0 0
        %1196 = vmatpush1.bf16.msra.mxu0 0
        %1197 = vmatprep.subr.bf16.mxu0 0
        %1198 = vmatpush1.bf16.msra.mxu0 0
        %1199 = vmatprep.subr.bf16.mxu0 0
        %1200 = vmatpush1.bf16.msra.mxu0 0
        %1201 = vmatprep.mubr.bf16.mxu0 0
        %1202 = vmatmul.mubr.bf16.gmra.mrb[0].mxu0 %v948
        %v1203 = vpop.f32.mrb[0].mxu0
        %v1204 = vadd.f32 %v994, %v1203
        %v1205 = vpop.f32.mrb[0].mxu0
        %v1206 = vpop.f32.mrb[0].mxu0
        %v1207 = vadd.f32 %v994, %v1206
        %v1208 = vpop.f32.mrb[0].mxu0
        %1209 = vdwg.mxu0
        %v1210 = vld [vmem:[%s755] sm:$0xf]
        %v1211 = vld [vmem:[%s755 + $0x4] sm:$0xf]
        %v1212 = vld [vmem:[%s755 + $0x8] sm:$0xf]
        %v1213 = vld [vmem:[%s755 + $0xc] sm:$0xf]
        %v1214 = vld [vmem:[%s1] sm:$0x1]
        %v1215 = vpack.c.bf16 %v1161, %v1161
        %v1216 = vpack.c.bf16 %v1163, %v1163
        %v1217 = vpack.c.bf16 %v1204, %v1204
        %vm1218 = vcmask 130048
        %v1220 = vsel %vm1218, %v1215, 0
        %v1223 = vsel %vm1218, %v1216, 0
        %1225 = vmatprep.subr.bf16.mxu0 0
        %1226 = vmatpush1.bf16.xpose.msra.mxu0 %v1223
        %1227 = vmatprep.subr.bf16.mxu0 0
        %1228 = vmatpush1.bf16.xpose.msra.mxu0 0
        %1229 = vmatprep.subr.bf16.mxu0 0
        %1230 = vmatpush1.bf16.xpose.msra.mxu0 0
        %1231 = vmatprep.subr.bf16.mxu0 0
        %1232 = vmatpush1.bf16.xpose.msra.mxu0 0
        %1233 = vmatprep.subr.bf16.mxu0 0
        %1234 = vmatpush1.bf16.xpose.msra.mxu0 0
        %1235 = vmatprep.subr.bf16.mxu0 0
        %1236 = vmatpush1.bf16.xpose.msra.mxu0 0
        %1237 = vmatprep.subr.bf16.mxu0 0
        %1238 = vmatpush1.bf16.xpose.msra.mxu0 0
        %1239 = vmatprep.subr.bf16.mxu0 0
        %1240 = vmatpush1.bf16.xpose.msra.mxu0 0
        %1241 = vmatprep.subr.bf16.mxu0 0
        %1242 = vmatpush1.bf16.xpose.msra.mxu0 0
        %1243 = vmatprep.subr.bf16.mxu0 0
        %1244 = vmatpush1.bf16.xpose.msra.mxu0 0
        %1245 = vmatprep.subr.bf16.mxu0 0
        %1246 = vmatpush1.bf16.xpose.msra.mxu0 0
        %1247 = vmatprep.subr.bf16.mxu0 0
        %1248 = vmatpush1.bf16.xpose.msra.mxu0 0
        %1249 = vmatprep.subr.bf16.mxu0 0
        %1250 = vmatpush1.bf16.xpose.msra.mxu0 0
        %1251 = vmatprep.subr.bf16.mxu0 0
        %1252 = vmatpush1.bf16.xpose.msra.mxu0 0
        %1253 = vmatprep.subr.bf16.mxu0 0
        %1254 = vmatpush1.bf16.xpose.msra.mxu0 0
        %1255 = vmatprep.subr.bf16.mxu0 0
        %1256 = vmatpush1.bf16.xpose.msra.mxu0 0
        %1257 = vmatprep.mubr.bf16.mxu0 0
        %1258 = vmatmul.mubr.bf16.gmra.mrb[0].mxu0 %v1220
        %v1259 = vpop.f32.mrb[0].mxu0
        %v1260 = vadd.f32 0.0, %v1259
        %v1261 = vpop.f32.mrb[0].mxu0
        %v1262 = vpop.f32.mrb[0].mxu0
        %v1263 = vpop.f32.mrb[0].mxu0
        %1264 = vdwg.mxu0
        %v1265 = vmul.f32 %v1260, 0.25
        %v1266 = vlaneseq
        %v1267 = vshrl.u32 %v1266, 7
        %v1268 = vsub.s32 0, %v1267
        %v1269 = vrot.slane %v1214, %v1268
        %v1270 = vadd.f32 %v1265, %v1269
        %vm1271 = vcmask 64512
        %v1272 = vsel %vm1271, %v1270, -inf
        %1273 = vmax.xlane.f32.xlu0 %v1272
        %v1274 = vpop.xlane.xlu0 %1273
        %v1275 = vsub.f32 %v1270, %v1274
        %v1276 = vmul.f32 %v1275, 1.442695
        %v1277 = vpow.pop %v1276
        %v1278 = vsel %vm1271, %v1277, 0.0
        %1279 = vadd.xlane.f32.xlu0 %v1278
        %v1280 = vpop.xlane.xlu0 %1279
        %v1281 = vrcp.pop %v1280
        %v1282 = vmul.f32 %v1277, %v1281
        %v1283 = vpack.c.bf16 %v1282, %v1282
        %v1285 = vsel %vm1271, %v1283, 0
        %vm1287 = vcmask 1043456
        %v1289 = vsel %vm1287, %v1217, 0
        %1291 = vmatprep.subr.bf16.mxu0 0
        %1292 = vmatpush1.bf16.msra.mxu0 %v1289
        %1293 = vmatprep.subr.bf16.mxu0 0
        %1294 = vmatpush1.bf16.msra.mxu0 0
        %1295 = vmatprep.subr.bf16.mxu0 0
        %1296 = vmatpush1.bf16.msra.mxu0 0
        %1297 = vmatprep.subr.bf16.mxu0 0
        %1298 = vmatpush1.bf16.msra.mxu0 0
        %1299 = vmatprep.subr.bf16.mxu0 0
        %1300 = vmatpush1.bf16.msra.mxu0 0
        %1301 = vmatprep.subr.bf16.mxu0 0
        %1302 = vmatpush1.bf16.msra.mxu0 0
        %1303 = vmatprep.subr.bf16.mxu0 0
        %1304 = vmatpush1.bf16.msra.mxu0 0
        %1305 = vmatprep.subr.bf16.mxu0 0
        %1306 = vmatpush1.bf16.msra.mxu0 0
        %1307 = vmatprep.subr.bf16.mxu0 0
        %1308 = vmatpush1.bf16.msra.mxu0 0
        %1309 = vmatprep.subr.bf16.mxu0 0
        %1310 = vmatpush1.bf16.msra.mxu0 0
        %1311 = vmatprep.subr.bf16.mxu0 0
        %1312 = vmatpush1.bf16.msra.mxu0 0
        %1313 = vmatprep.subr.bf16.mxu0 0
        %1314 = vmatpush1.bf16.msra.mxu0 0
        %1315 = vmatprep.subr.bf16.mxu0 0
        %1316 = vmatpush1.bf16.msra.mxu0 0
        %1317 = vmatprep.subr.bf16.mxu0 0
        %1318 = vmatpush1.bf16.msra.mxu0 0
        %1319 = vmatprep.subr.bf16.mxu0 0
        %1320 = vmatpush1.bf16.msra.mxu0 0
        %1321 = vmatprep.subr.bf16.mxu0 0
        %1322 = vmatpush1.bf16.msra.mxu0 0
        %1323 = vmatprep.mubr.bf16.mxu0 0
        %1324 = vmatmul.mubr.bf16.gmra.mrb[0].mxu0 %v1285
        %v1325 = vpop.f32.mrb[0].mxu0
        %v1326 = vadd.f32 0.0, %v1325
        %v1327 = vpop.f32.mrb[0].mxu0
        %v1328 = vpop.f32.mrb[0].mxu0
        %v1329 = vpop.f32.mrb[0].mxu0
        %1330 = vdwg.mxu0
        %v1331 = vpack.c.bf16 %v1326, %v1326
        %1333 = vrot.lane.b32.xlu0 %v1215, 112
        %v1334 = vpop.permute.xlu0 %1333
        %1336 = vrot.lane.b32.xlu0 %v1216, 112
        %v1337 = vpop.permute.xlu0 %1336
        %v1339 = vsel %vm1218, %v1334, 0
        %v1342 = vsel %vm1218, %v1337, 0
        %1344 = vmatprep.subr.bf16.mxu0 0
        %1345 = vmatpush1.bf16.xpose.msra.mxu0 %v1342
        %1346 = vmatprep.subr.bf16.mxu0 0
        %1347 = vmatpush1.bf16.xpose.msra.mxu0 0
        %1348 = vmatprep.subr.bf16.mxu0 0
        %1349 = vmatpush1.bf16.xpose.msra.mxu0 0
        %1350 = vmatprep.subr.bf16.mxu0 0
        %1351 = vmatpush1.bf16.xpose.msra.mxu0 0
        %1352 = vmatprep.subr.bf16.mxu0 0
        %1353 = vmatpush1.bf16.xpose.msra.mxu0 0
        %1354 = vmatprep.subr.bf16.mxu0 0
        %1355 = vmatpush1.bf16.xpose.msra.mxu0 0
        %1356 = vmatprep.subr.bf16.mxu0 0
        %1357 = vmatpush1.bf16.xpose.msra.mxu0 0
        %1358 = vmatprep.subr.bf16.mxu0 0
        %1359 = vmatpush1.bf16.xpose.msra.mxu0 0
        %1360 = vmatprep.subr.bf16.mxu0 0
        %1361 = vmatpush1.bf16.xpose.msra.mxu0 0
        %1362 = vmatprep.subr.bf16.mxu0 0
        %1363 = vmatpush1.bf16.xpose.msra.mxu0 0
        %1364 = vmatprep.subr.bf16.mxu0 0
        %1365 = vmatpush1.bf16.xpose.msra.mxu0 0
        %1366 = vmatprep.subr.bf16.mxu0 0
        %1367 = vmatpush1.bf16.xpose.msra.mxu0 0
        %1368 = vmatprep.subr.bf16.mxu0 0
        %1369 = vmatpush1.bf16.xpose.msra.mxu0 0
        %1370 = vmatprep.subr.bf16.mxu0 0
        %1371 = vmatpush1.bf16.xpose.msra.mxu0 0
        %1372 = vmatprep.subr.bf16.mxu0 0
        %1373 = vmatpush1.bf16.xpose.msra.mxu0 0
        %1374 = vmatprep.subr.bf16.mxu0 0
        %1375 = vmatpush1.bf16.xpose.msra.mxu0 0
        %1376 = vmatprep.mubr.bf16.mxu0 0
        %1377 = vmatmul.mubr.bf16.gmra.mrb[0].mxu0 %v1339
        %v1378 = vpop.f32.mrb[0].mxu0
        %v1379 = vadd.f32 0.0, %v1378
        %v1380 = vpop.f32.mrb[0].mxu0
        %v1381 = vpop.f32.mrb[0].mxu0
        %v1382 = vpop.f32.mrb[0].mxu0
        %1383 = vdwg.mxu0
        %v1384 = vmul.f32 %v1379, 0.25
        %v1385 = vadd.f32 %v1384, %v1269
        %v1386 = vsel %vm1271, %v1385, -inf
        %1387 = vmax.xlane.f32.xlu0 %v1386
        %v1388 = vpop.xlane.xlu0 %1387
        %v1389 = vsub.f32 %v1385, %v1388
        %v1390 = vmul.f32 %v1389, 1.442695
        %v1391 = vpow.pop %v1390
        %v1392 = vsel %vm1271, %v1391, 0.0
        %1393 = vadd.xlane.f32.xlu0 %v1392
        %v1394 = vpop.xlane.xlu0 %1393
        %v1395 = vrcp.pop %v1394
        %v1396 = vmul.f32 %v1391, %v1395
        %v1397 = vpack.c.bf16 %v1396, %v1396
        %1399 = vrot.lane.b32.xlu0 %v1217, 112
        %v1400 = vpop.permute.xlu0 %1399
        %v1402 = vsel %vm1271, %v1397, 0
        %v1405 = vsel %vm1287, %v1400, 0
        %1407 = vmatprep.subr.bf16.mxu0 0
        %1408 = vmatpush1.bf16.msra.mxu0 %v1405
        %1409 = vmatprep.subr.bf16.mxu0 0
        %1410 = vmatpush1.bf16.msra.mxu0 0
        %1411 = vmatprep.subr.bf16.mxu0 0
        %1412 = vmatpush1.bf16.msra.mxu0 0
        %1413 = vmatprep.subr.bf16.mxu0 0
        %1414 = vmatpush1.bf16.msra.mxu0 0
        %1415 = vmatprep.subr.bf16.mxu0 0
        %1416 = vmatpush1.bf16.msra.mxu0 0
        %1417 = vmatprep.subr.bf16.mxu0 0
        %1418 = vmatpush1.bf16.msra.mxu0 0
        %1419 = vmatprep.subr.bf16.mxu0 0
        %1420 = vmatpush1.bf16.msra.mxu0 0
        %1421 = vmatprep.subr.bf16.mxu0 0
        %1422 = vmatpush1.bf16.msra.mxu0 0
        %1423 = vmatprep.subr.bf16.mxu0 0
        %1424 = vmatpush1.bf16.msra.mxu0 0
        %1425 = vmatprep.subr.bf16.mxu0 0
        %1426 = vmatpush1.bf16.msra.mxu0 0
        %1427 = vmatprep.subr.bf16.mxu0 0
        %1428 = vmatpush1.bf16.msra.mxu0 0
        %1429 = vmatprep.subr.bf16.mxu0 0
        %1430 = vmatpush1.bf16.msra.mxu0 0
        %1431 = vmatprep.subr.bf16.mxu0 0
        %1432 = vmatpush1.bf16.msra.mxu0 0
        %1433 = vmatprep.subr.bf16.mxu0 0
        %1434 = vmatpush1.bf16.msra.mxu0 0
        %1435 = vmatprep.subr.bf16.mxu0 0
        %1436 = vmatpush1.bf16.msra.mxu0 0
        %1437 = vmatprep.subr.bf16.mxu0 0
        %1438 = vmatpush1.bf16.msra.mxu0 0
        %1439 = vmatprep.mubr.bf16.mxu0 0
        %1440 = vmatmul.mubr.bf16.gmra.mrb[0].mxu0 %v1402
        %v1441 = vpop.f32.mrb[0].mxu0
        %v1442 = vadd.f32 0.0, %v1441
        %v1443 = vpop.f32.mrb[0].mxu0
        %v1444 = vpop.f32.mrb[0].mxu0
        %v1445 = vpop.f32.mrb[0].mxu0
        %1446 = vdwg.mxu0
        %v1447 = vpack.c.bf16 %v1442, %v1442
        %v1450 = vunpack.c.l.b16 %v1212
        %v1451 = vunpack.c.l.b16 %v1213
        %v1452 = vpack.c.b16 %v1451, %v1450
        %v1455 = vsel %vm1218, %v1447, 0
        %1457 = vmatprep.subr.bf16.mxu0 0
        %1458 = vmatpush1.bf16.msra.mxu0 %v1452
        %1459 = vmatprep.subr.bf16.mxu0 0
        %1460 = vmatpush1.bf16.msra.mxu0 0
        %1461 = vmatprep.subr.bf16.mxu0 0
        %1462 = vmatpush1.bf16.msra.mxu0 0
        %1463 = vmatprep.subr.bf16.mxu0 0
        %1464 = vmatpush1.bf16.msra.mxu0 0
        %1465 = vmatprep.subr.bf16.mxu0 0
        %1466 = vmatpush1.bf16.msra.mxu0 0
        %1467 = vmatprep.subr.bf16.mxu0 0
        %1468 = vmatpush1.bf16.msra.mxu0 0
        %1469 = vmatprep.subr.bf16.mxu0 0
        %1470 = vmatpush1.bf16.msra.mxu0 0
        %1471 = vmatprep.subr.bf16.mxu0 0
        %1472 = vmatpush1.bf16.msra.mxu0 0
        %1473 = vmatprep.subr.bf16.mxu0 0
        %1474 = vmatpush1.bf16.msra.mxu0 0
        %1475 = vmatprep.subr.bf16.mxu0 0
        %1476 = vmatpush1.bf16.msra.mxu0 0
        %1477 = vmatprep.subr.bf16.mxu0 0
        %1478 = vmatpush1.bf16.msra.mxu0 0
        %1479 = vmatprep.subr.bf16.mxu0 0
        %1480 = vmatpush1.bf16.msra.mxu0 0
        %1481 = vmatprep.subr.bf16.mxu0 0
        %1482 = vmatpush1.bf16.msra.mxu0 0
        %1483 = vmatprep.subr.bf16.mxu0 0
        %1484 = vmatpush1.bf16.msra.mxu0 0
        %1485 = vmatprep.subr.bf16.mxu0 0
        %1486 = vmatpush1.bf16.msra.mxu0 0
        %1487 = vmatprep.subr.bf16.mxu0 0
        %1488 = vmatpush1.bf16.msra.mxu0 0
        %1489 = vmatprep.mubr.bf16.mxu0 0
        %1490 = vmatmul.mubr.bf16.gmra.mrb[0].mxu0 %v1455
        %v1491 = vpop.f32.mrb[0].mxu0
        %v1492 = vadd.f32 0.0, %v1491
        %v1493 = vpop.f32.mrb[0].mxu0
        %v1494 = vpop.f32.mrb[0].mxu0
        %v1495 = vpop.f32.mrb[0].mxu0
        %1496 = vdwg.mxu0
        %v1499 = vunpack.c.l.b16 %v1210
        %v1500 = vunpack.c.l.b16 %v1211
        %v1501 = vpack.c.b16 %v1500, %v1499
        %v1504 = vsel %vm1218, %v1331, 0
        %1506 = vmatprep.subr.bf16.mxu0 0
        %1507 = vmatpush1.bf16.msra.mxu0 %v1501
        %1508 = vmatprep.subr.bf16.mxu0 0
        %1509 = vmatpush1.bf16.msra.mxu0 0
        %1510 = vmatprep.subr.bf16.mxu0 0
        %1511 = vmatpush1.bf16.msra.mxu0 0
        %1512 = vmatprep.subr.bf16.mxu0 0
        %1513 = vmatpush1.bf16.msra.mxu0 0
        %1514 = vmatprep.subr.bf16.mxu0 0
        %1515 = vmatpush1.bf16.msra.mxu0 0
        %1516 = vmatprep.subr.bf16.mxu0 0
        %1517 = vmatpush1.bf16.msra.mxu0 0
        %1518 = vmatprep.subr.bf16.mxu0 0
        %1519 = vmatpush1.bf16.msra.mxu0 0
        %1520 = vmatprep.subr.bf16.mxu0 0
        %1521 = vmatpush1.bf16.msra.mxu0 0
        %1522 = vmatprep.subr.bf16.mxu0 0
        %1523 = vmatpush1.bf16.msra.mxu0 0
        %1524 = vmatprep.subr.bf16.mxu0 0
        %1525 = vmatpush1.bf16.msra.mxu0 0
        %1526 = vmatprep.subr.bf16.mxu0 0
        %1527 = vmatpush1.bf16.msra.mxu0 0
        %1528 = vmatprep.subr.bf16.mxu0 0
        %1529 = vmatpush1.bf16.msra.mxu0 0
        %1530 = vmatprep.subr.bf16.mxu0 0
        %1531 = vmatpush1.bf16.msra.mxu0 0
        %1532 = vmatprep.subr.bf16.mxu0 0
        %1533 = vmatpush1.bf16.msra.mxu0 0
        %1534 = vmatprep.subr.bf16.mxu0 0
        %1535 = vmatpush1.bf16.msra.mxu0 0
        %1536 = vmatprep.subr.bf16.mxu0 0
        %1537 = vmatpush1.bf16.msra.mxu0 0
        %1538 = vmatprep.mubr.bf16.mxu0 0
        %1539 = vmatmul.mubr.bf16.gmra.mrb[0].mxu0 %v1504
        %v1540 = vpop.f32.mrb[0].mxu0
        %v1541 = vadd.f32 %v1492, %v1540
        %v1542 = vpop.f32.mrb[0].mxu0
        %v1543 = vpop.f32.mrb[0].mxu0
        %v1544 = vpop.f32.mrb[0].mxu0
        %1545 = vdwg.mxu0
        %v1546 = vld [vmem:[%s1 + $0x1] sm:$0x1]
        %v1547 = vpack.c.bf16 %v1165, %v1165
        %v1548 = vpack.c.bf16 %v1167, %v1167
        %v1549 = vpack.c.bf16 %v1207, %v1207
        %v1551 = vsel %vm1218, %v1547, 0
        %v1554 = vsel %vm1218, %v1548, 0
        %1556 = vmatprep.subr.bf16.mxu0 0
        %1557 = vmatpush1.bf16.xpose.msra.mxu0 %v1554
        %1558 = vmatprep.subr.bf16.mxu0 0
        %1559 = vmatpush1.bf16.xpose.msra.mxu0 0
        %1560 = vmatprep.subr.bf16.mxu0 0
        %1561 = vmatpush1.bf16.xpose.msra.mxu0 0
        %1562 = vmatprep.subr.bf16.mxu0 0
        %1563 = vmatpush1.bf16.xpose.msra.mxu0 0
        %1564 = vmatprep.subr.bf16.mxu0 0
        %1565 = vmatpush1.bf16.xpose.msra.mxu0 0
        %1566 = vmatprep.subr.bf16.mxu0 0
        %1567 = vmatpush1.bf16.xpose.msra.mxu0 0
        %1568 = vmatprep.subr.bf16.mxu0 0
        %1569 = vmatpush1.bf16.xpose.msra.mxu0 0
        %1570 = vmatprep.subr.bf16.mxu0 0
        %1571 = vmatpush1.bf16.xpose.msra.mxu0 0
        %1572 = vmatprep.subr.bf16.mxu0 0
        %1573 = vmatpush1.bf16.xpose.msra.mxu0 0
        %1574 = vmatprep.subr.bf16.mxu0 0
        %1575 = vmatpush1.bf16.xpose.msra.mxu0 0
        %1576 = vmatprep.subr.bf16.mxu0 0
        %1577 = vmatpush1.bf16.xpose.msra.mxu0 0
        %1578 = vmatprep.subr.bf16.mxu0 0
        %1579 = vmatpush1.bf16.xpose.msra.mxu0 0
        %1580 = vmatprep.subr.bf16.mxu0 0
        %1581 = vmatpush1.bf16.xpose.msra.mxu0 0
        %1582 = vmatprep.subr.bf16.mxu0 0
        %1583 = vmatpush1.bf16.xpose.msra.mxu0 0
        %1584 = vmatprep.subr.bf16.mxu0 0
        %1585 = vmatpush1.bf16.xpose.msra.mxu0 0
        %1586 = vmatprep.subr.bf16.mxu0 0
        %1587 = vmatpush1.bf16.xpose.msra.mxu0 0
        %1588 = vmatprep.mubr.bf16.mxu0 0
        %1589 = vmatmul.mubr.bf16.gmra.mrb[0].mxu0 %v1551
        %v1590 = vpop.f32.mrb[0].mxu0
        %v1591 = vadd.f32 0.0, %v1590
        %v1592 = vpop.f32.mrb[0].mxu0
        %v1593 = vpop.f32.mrb[0].mxu0
        %v1594 = vpop.f32.mrb[0].mxu0
        %1595 = vdwg.mxu0
        %v1596 = vmul.f32 %v1591, 0.25
        %v1597 = vlaneseq
        %v1598 = vshrl.u32 %v1597, 7
        %v1599 = vsub.s32 0, %v1598
        %v1600 = vrot.slane %v1546, %v1599
        %v1601 = vadd.f32 %v1596, %v1600
        %v1602 = vsel %vm1271, %v1601, -inf
        %1603 = vmax.xlane.f32.xlu0 %v1602
        %v1604 = vpop.xlane.xlu0 %1603
        %v1605 = vsub.f32 %v1601, %v1604
        %v1606 = vmul.f32 %v1605, 1.442695
        %v1607 = vpow.pop %v1606
        %v1608 = vsel %vm1271, %v1607, 0.0
        %1609 = vadd.xlane.f32.xlu0 %v1608
        %v1610 = vpop.xlane.xlu0 %1609
        %v1611 = vrcp.pop %v1610
        %v1612 = vmul.f32 %v1607, %v1611
        %v1613 = vpack.c.bf16 %v1612, %v1612
        %v1615 = vsel %vm1271, %v1613, 0
        %v1618 = vsel %vm1287, %v1549, 0
        %1620 = vmatprep.subr.bf16.mxu0 0
        %1621 = vmatpush1.bf16.msra.mxu0 %v1618
        %1622 = vmatprep.subr.bf16.mxu0 0
        %1623 = vmatpush1.bf16.msra.mxu0 0
        %1624 = vmatprep.subr.bf16.mxu0 0
        %1625 = vmatpush1.bf16.msra.mxu0 0
        %1626 = vmatprep.subr.bf16.mxu0 0
        %1627 = vmatpush1.bf16.msra.mxu0 0
        %1628 = vmatprep.subr.bf16.mxu0 0
        %1629 = vmatpush1.bf16.msra.mxu0 0
        %1630 = vmatprep.subr.bf16.mxu0 0
        %1631 = vmatpush1.bf16.msra.mxu0 0
        %1632 = vmatprep.subr.bf16.mxu0 0
        %1633 = vmatpush1.bf16.msra.mxu0 0
        %1634 = vmatprep.subr.bf16.mxu0 0
        %1635 = vmatpush1.bf16.msra.mxu0 0
        %1636 = vmatprep.subr.bf16.mxu0 0
        %1637 = vmatpush1.bf16.msra.mxu0 0
        %1638 = vmatprep.subr.bf16.mxu0 0
        %1639 = vmatpush1.bf16.msra.mxu0 0
        %1640 = vmatprep.subr.bf16.mxu0 0
        %1641 = vmatpush1.bf16.msra.mxu0 0
        %1642 = vmatprep.subr.bf16.mxu0 0
        %1643 = vmatpush1.bf16.msra.mxu0 0
        %1644 = vmatprep.subr.bf16.mxu0 0
        %1645 = vmatpush1.bf16.msra.mxu0 0
        %1646 = vmatprep.subr.bf16.mxu0 0
        %1647 = vmatpush1.bf16.msra.mxu0 0
        %1648 = vmatprep.subr.bf16.mxu0 0
        %1649 = vmatpush1.bf16.msra.mxu0 0
        %1650 = vmatprep.subr.bf16.mxu0 0
        %1651 = vmatpush1.bf16.msra.mxu0 0
        %1652 = vmatprep.mubr.bf16.mxu0 0
        %1653 = vmatmul.mubr.bf16.gmra.mrb[0].mxu0 %v1615
        %v1654 = vpop.f32.mrb[0].mxu0
        %v1655 = vadd.f32 0.0, %v1654
        %v1656 = vpop.f32.mrb[0].mxu0
        %v1657 = vpop.f32.mrb[0].mxu0
        %v1658 = vpop.f32.mrb[0].mxu0
        %1659 = vdwg.mxu0
        %v1660 = vpack.c.bf16 %v1655, %v1655
        %1662 = vrot.lane.b32.xlu0 %v1547, 112
        %v1663 = vpop.permute.xlu0 %1662
        %1665 = vrot.lane.b32.xlu0 %v1548, 112
        %v1666 = vpop.permute.xlu0 %1665
        %v1668 = vsel %vm1218, %v1663, 0
        %v1671 = vsel %vm1218, %v1666, 0
        %1673 = vmatprep.subr.bf16.mxu0 0
        %1674 = vmatpush1.bf16.xpose.msra.mxu0 %v1671
        %1675 = vmatprep.subr.bf16.mxu0 0
        %1676 = vmatpush1.bf16.xpose.msra.mxu0 0
        %1677 = vmatprep.subr.bf16.mxu0 0
        %1678 = vmatpush1.bf16.xpose.msra.mxu0 0
        %1679 = vmatprep.subr.bf16.mxu0 0
        %1680 = vmatpush1.bf16.xpose.msra.mxu0 0
        %1681 = vmatprep.subr.bf16.mxu0 0
        %1682 = vmatpush1.bf16.xpose.msra.mxu0 0
        %1683 = vmatprep.subr.bf16.mxu0 0
        %1684 = vmatpush1.bf16.xpose.msra.mxu0 0
        %1685 = vmatprep.subr.bf16.mxu0 0
        %1686 = vmatpush1.bf16.xpose.msra.mxu0 0
        %1687 = vmatprep.subr.bf16.mxu0 0
        %1688 = vmatpush1.bf16.xpose.msra.mxu0 0
        %1689 = vmatprep.subr.bf16.mxu0 0
        %1690 = vmatpush1.bf16.xpose.msra.mxu0 0
        %1691 = vmatprep.subr.bf16.mxu0 0
        %1692 = vmatpush1.bf16.xpose.msra.mxu0 0
        %1693 = vmatprep.subr.bf16.mxu0 0
        %1694 = vmatpush1.bf16.xpose.msra.mxu0 0
        %1695 = vmatprep.subr.bf16.mxu0 0
        %1696 = vmatpush1.bf16.xpose.msra.mxu0 0
        %1697 = vmatprep.subr.bf16.mxu0 0
        %1698 = vmatpush1.bf16.xpose.msra.mxu0 0
        %1699 = vmatprep.subr.bf16.mxu0 0
        %1700 = vmatpush1.bf16.xpose.msra.mxu0 0
        %1701 = vmatprep.subr.bf16.mxu0 0
        %1702 = vmatpush1.bf16.xpose.msra.mxu0 0
        %1703 = vmatprep.subr.bf16.mxu0 0
        %1704 = vmatpush1.bf16.xpose.msra.mxu0 0
        %1705 = vmatprep.mubr.bf16.mxu0 0
        %1706 = vmatmul.mubr.bf16.gmra.mrb[0].mxu0 %v1668
        %v1707 = vpop.f32.mrb[0].mxu0
        %v1708 = vadd.f32 0.0, %v1707
        %v1709 = vpop.f32.mrb[0].mxu0
        %v1710 = vpop.f32.mrb[0].mxu0
        %v1711 = vpop.f32.mrb[0].mxu0
        %1712 = vdwg.mxu0
        %v1713 = vmul.f32 %v1708, 0.25
        %v1714 = vadd.f32 %v1713, %v1600
        %v1715 = vsel %vm1271, %v1714, -inf
        %1716 = vmax.xlane.f32.xlu0 %v1715
        %v1717 = vpop.xlane.xlu0 %1716
        %v1718 = vsub.f32 %v1714, %v1717
        %v1719 = vmul.f32 %v1718, 1.442695
        %v1720 = vpow.pop %v1719
        %v1721 = vsel %vm1271, %v1720, 0.0
        %1722 = vadd.xlane.f32.xlu0 %v1721
        %v1723 = vpop.xlane.xlu0 %1722
        %v1724 = vrcp.pop %v1723
        %v1725 = vmul.f32 %v1720, %v1724
        %v1726 = vpack.c.bf16 %v1725, %v1725
        %1728 = vrot.lane.b32.xlu0 %v1549, 112
        %v1729 = vpop.permute.xlu0 %1728
        %v1731 = vsel %vm1271, %v1726, 0
        %v1734 = vsel %vm1287, %v1729, 0
        %1736 = vmatprep.subr.bf16.mxu0 0
        %1737 = vmatpush1.bf16.msra.mxu0 %v1734
        %1738 = vmatprep.subr.bf16.mxu0 0
        %1739 = vmatpush1.bf16.msra.mxu0 0
        %1740 = vmatprep.subr.bf16.mxu0 0
        %1741 = vmatpush1.bf16.msra.mxu0 0
        %1742 = vmatprep.subr.bf16.mxu0 0
        %1743 = vmatpush1.bf16.msra.mxu0 0
        %1744 = vmatprep.subr.bf16.mxu0 0
        %1745 = vmatpush1.bf16.msra.mxu0 0
        %1746 = vmatprep.subr.bf16.mxu0 0
        %1747 = vmatpush1.bf16.msra.mxu0 0
        %1748 = vmatprep.subr.bf16.mxu0 0
        %1749 = vmatpush1.bf16.msra.mxu0 0
        %1750 = vmatprep.subr.bf16.mxu0 0
        %1751 = vmatpush1.bf16.msra.mxu0 0
        %1752 = vmatprep.subr.bf16.mxu0 0
        %1753 = vmatpush1.bf16.msra.mxu0 0
        %1754 = vmatprep.subr.bf16.mxu0 0
        %1755 = vmatpush1.bf16.msra.mxu0 0
        %1756 = vmatprep.subr.bf16.mxu0 0
        %1757 = vmatpush1.bf16.msra.mxu0 0
        %1758 = vmatprep.subr.bf16.mxu0 0
        %1759 = vmatpush1.bf16.msra.mxu0 0
        %1760 = vmatprep.subr.bf16.mxu0 0
        %1761 = vmatpush1.bf16.msra.mxu0 0
        %1762 = vmatprep.subr.bf16.mxu0 0
        %1763 = vmatpush1.bf16.msra.mxu0 0
        %1764 = vmatprep.subr.bf16.mxu0 0
        %1765 = vmatpush1.bf16.msra.mxu0 0
        %1766 = vmatprep.subr.bf16.mxu0 0
        %1767 = vmatpush1.bf16.msra.mxu0 0
        %1768 = vmatprep.mubr.bf16.mxu0 0
        %1769 = vmatmul.mubr.bf16.gmra.mrb[0].mxu0 %v1731
        %v1770 = vpop.f32.mrb[0].mxu0
        %v1771 = vadd.f32 0.0, %v1770
        %v1772 = vpop.f32.mrb[0].mxu0
        %v1773 = vpop.f32.mrb[0].mxu0
        %v1774 = vpop.f32.mrb[0].mxu0
        %1775 = vdwg.mxu0
        %v1776 = vpack.c.bf16 %v1771, %v1771
        %v1778 = vsel %vm1218, %v1776, 0
        %1780 = vmatprep.subr.bf16.mxu0 0
        %1781 = vmatpush1.bf16.msra.mxu0 %v1452
        %1782 = vmatprep.subr.bf16.mxu0 0
        %1783 = vmatpush1.bf16.msra.mxu0 0
        %1784 = vmatprep.subr.bf16.mxu0 0
        %1785 = vmatpush1.bf16.msra.mxu0 0
        %1786 = vmatprep.subr.bf16.mxu0 0
        %1787 = vmatpush1.bf16.msra.mxu0 0
        %1788 = vmatprep.subr.bf16.mxu0 0
        %1789 = vmatpush1.bf16.msra.mxu0 0
        %1790 = vmatprep.subr.bf16.mxu0 0
        %1791 = vmatpush1.bf16.msra.mxu0 0
        %1792 = vmatprep.subr.bf16.mxu0 0
        %1793 = vmatpush1.bf16.msra.mxu0 0
        %1794 = vmatprep.subr.bf16.mxu0 0
        %1795 = vmatpush1.bf16.msra.mxu0 0
        %1796 = vmatprep.subr.bf16.mxu0 0
        %1797 = vmatpush1.bf16.msra.mxu0 0
        %1798 = vmatprep.subr.bf16.mxu0 0
        %1799 = vmatpush1.bf16.msra.mxu0 0
        %1800 = vmatprep.subr.bf16.mxu0 0
        %1801 = vmatpush1.bf16.msra.mxu0 0
        %1802 = vmatprep.subr.bf16.mxu0 0
        %1803 = vmatpush1.bf16.msra.mxu0 0
        %1804 = vmatprep.subr.bf16.mxu0 0
        %1805 = vmatpush1.bf16.msra.mxu0 0
        %1806 = vmatprep.subr.bf16.mxu0 0
        %1807 = vmatpush1.bf16.msra.mxu0 0
        %1808 = vmatprep.subr.bf16.mxu0 0
        %1809 = vmatpush1.bf16.msra.mxu0 0
        %1810 = vmatprep.subr.bf16.mxu0 0
        %1811 = vmatpush1.bf16.msra.mxu0 0
        %1812 = vmatprep.mubr.bf16.mxu0 0
        %1813 = vmatmul.mubr.bf16.gmra.mrb[0].mxu0 %v1778
        %v1814 = vpop.f32.mrb[0].mxu0
        %v1815 = vadd.f32 0.0, %v1814
        %v1816 = vpop.f32.mrb[0].mxu0
        %v1817 = vpop.f32.mrb[0].mxu0
        %v1818 = vpop.f32.mrb[0].mxu0
        %1819 = vdwg.mxu0
        %v1821 = vsel %vm1218, %v1660, 0
        %1823 = vmatprep.subr.bf16.mxu0 0
        %1824 = vmatpush1.bf16.msra.mxu0 %v1501
        %1825 = vmatprep.subr.bf16.mxu0 0
        %1826 = vmatpush1.bf16.msra.mxu0 0
        %1827 = vmatprep.subr.bf16.mxu0 0
        %1828 = vmatpush1.bf16.msra.mxu0 0
        %1829 = vmatprep.subr.bf16.mxu0 0
        %1830 = vmatpush1.bf16.msra.mxu0 0
        %1831 = vmatprep.subr.bf16.mxu0 0
        %1832 = vmatpush1.bf16.msra.mxu0 0
        %1833 = vmatprep.subr.bf16.mxu0 0
        %1834 = vmatpush1.bf16.msra.mxu0 0
        %1835 = vmatprep.subr.bf16.mxu0 0
        %1836 = vmatpush1.bf16.msra.mxu0 0
        %1837 = vmatprep.subr.bf16.mxu0 0
        %1838 = vmatpush1.bf16.msra.mxu0 0
        %1839 = vmatprep.subr.bf16.mxu0 0
        %1840 = vmatpush1.bf16.msra.mxu0 0
        %1841 = vmatprep.subr.bf16.mxu0 0
        %1842 = vmatpush1.bf16.msra.mxu0 0
        %1843 = vmatprep.subr.bf16.mxu0 0
        %1844 = vmatpush1.bf16.msra.mxu0 0
        %1845 = vmatprep.subr.bf16.mxu0 0
        %1846 = vmatpush1.bf16.msra.mxu0 0
        %1847 = vmatprep.subr.bf16.mxu0 0
        %1848 = vmatpush1.bf16.msra.mxu0 0
        %1849 = vmatprep.subr.bf16.mxu0 0
        %1850 = vmatpush1.bf16.msra.mxu0 0
        %1851 = vmatprep.subr.bf16.mxu0 0
        %1852 = vmatpush1.bf16.msra.mxu0 0
        %1853 = vmatprep.subr.bf16.mxu0 0
        %1854 = vmatpush1.bf16.msra.mxu0 0
        %1855 = vmatprep.mubr.bf16.mxu0 0
        %1856 = vmatmul.mubr.bf16.gmra.mrb[0].mxu0 %v1821
        %v1857 = vpop.f32.mrb[0].mxu0
        %v1858 = vadd.f32 %v1815, %v1857
        %v1859 = vpop.f32.mrb[0].mxu0
        %v1860 = vpop.f32.mrb[0].mxu0
        %v1861 = vpop.f32.mrb[0].mxu0
        %1862 = vdwg.mxu0
        %v1863 = vld [vmem:[%s873] sm:$0x1]
        %v1865 = vlaneseq
        %v1866 = vshrl.u32 %v1865, 7
        %v1867 = vsub.s32 0, %v1866
        %v1868 = vrot.slane %v1863, %v1867
        %v1870 = vadd.f32 %v1541, %v1868
        %v1871 = vadd.f32 %v1858, %v1868
        %v1872 = vadd.f32 %v946, %v1870
        %v1873 = vadd.f32 %v947, %v1871
        %v1874 = vld [vmem:[%s876] sm:$0x1]
        %v1875 = vld [vmem:[%s879] sm:$0x1]
        %1876 = vadd.xlane.f32.xlu0 %v1872
        %v1877 = vpop.xlane.xlu0 %1876
        %1878 = vadd.xlane.f32.xlu0 %v1873
        %v1879 = vpop.xlane.xlu0 %1878
        %v1880 = vmul.f32 %v1877, 0.03125
        %v1881 = vmul.f32 %v1879, 0.03125
        %v1882 = vlaneseq
        %v1883 = vand.u32 %v1882, 127
        %vm1884 = vcmp.lt.s32.totalorder %v1883, 32
        %v1885 = vsub.f32 %v1872, %v1880
        %v1886 = vsub.f32 %v1873, %v1881
        %v1887 = vsel %vm1884, %v1885, 0.0
        %v1888 = vsel %vm1884, %v1886, 0.0
        %v1889 = vmul.f32 %v1887, %v1887
        %v1890 = vmul.f32 %v1888, %v1888
        %1891 = vadd.xlane.f32.xlu0 %v1889
        %v1892 = vpop.xlane.xlu0 %1891
        %1893 = vadd.xlane.f32.xlu0 %v1890
        %v1894 = vpop.xlane.xlu0 %1893
        %v1895 = vmul.f32 %v1892, 0.03125
        %v1896 = vmul.f32 %v1894, 0.03125
        %v1897 = vadd.f32 %v1895, 1e-12
        %v1898 = vadd.f32 %v1896, 1e-12
        %v1899 = vrsqrt.pop %v1897
        %v1900 = vrsqrt.pop %v1898
        %v1901 = vmul.f32 %v1887, %v1899
        %v1902 = vmul.f32 %v1888, %v1900
        %v1904 = vlaneseq
        %v1905 = vshrl.u32 %v1904, 7
        %v1906 = vsub.s32 0, %v1905
        %v1907 = vrot.slane %v1874, %v1906
        %v1909 = vmul.f32 %v1901, %v1907
        %v1910 = vmul.f32 %v1902, %v1907
        %v1912 = vlaneseq
        %v1913 = vshrl.u32 %v1912, 7
        %v1914 = vsub.s32 0, %v1913
        %v1915 = vrot.slane %v1875, %v1914
        %v1917 = vadd.f32 %v1909, %v1915
        %v1918 = vadd.f32 %v1910, %v1915
        %v1919 = vpack.c.bf16 %v1918, %v1917
        %v1920 = vld [vmem:[%s764] sm:$0xf]
        %v1921 = vld [vmem:[%s764 + $0x4] sm:$0xf]
        %v1922 = vld [vmem:[%s764 + $0x8] sm:$0xf]
        %v1923 = vld [vmem:[%s764 + $0xc] sm:$0xf]
        %v1924 = vld [vmem:[%s764 + $0x10] sm:$0xf]
        %v1925 = vld [vmem:[%s764 + $0x14] sm:$0xf]
        %v1926 = vld [vmem:[%s764 + $0x18] sm:$0xf]
        %v1927 = vld [vmem:[%s764 + $0x1c] sm:$0xf]
        %v1928 = vld [vmem:[%s764 + $0x20] sm:$0xf]
        %v1929 = vld [vmem:[%s764 + $0x24] sm:$0xf]
        %v1930 = vld [vmem:[%s764 + $0x28] sm:$0xf]
        %v1931 = vld [vmem:[%s764 + $0x2c] sm:$0xf]
        %v1932 = vld [vmem:[%s764 + $0x30] sm:$0xf]
        %v1933 = vld [vmem:[%s764 + $0x34] sm:$0xf]
        %v1934 = vld [vmem:[%s764 + $0x38] sm:$0xf]
        %v1935 = vld [vmem:[%s764 + $0x3c] sm:$0xf]
        %v1936 = vld [vmem:[%s882] sm:$0x1]
        %v1938 = vlaneseq
        %v1939 = vshrl.u32 %v1938, 7
        %v1940 = vsub.s32 0, %v1939
        %v1941 = vrot.slane %v1936, %v1940
        %v1959 = vunpack.c.l.b16 %v1920
        %v1960 = vunpack.c.l.b16 %v1921
        %v1961 = vunpack.c.l.b16 %v1922
        %v1962 = vunpack.c.l.b16 %v1923
        %v1963 = vunpack.c.l.b16 %v1924
        %v1964 = vunpack.c.l.b16 %v1925
        %v1965 = vunpack.c.l.b16 %v1926
        %v1966 = vunpack.c.l.b16 %v1927
        %v1967 = vunpack.c.l.b16 %v1928
        %v1968 = vunpack.c.l.b16 %v1929
        %v1969 = vunpack.c.l.b16 %v1930
        %v1970 = vunpack.c.l.b16 %v1931
        %v1971 = vunpack.c.l.b16 %v1932
        %v1972 = vunpack.c.l.b16 %v1933
        %v1973 = vunpack.c.l.b16 %v1934
        %v1974 = vunpack.c.l.b16 %v1935
        %v1975 = vpack.c.b16 %v1960, %v1959
        %v1976 = vpack.c.b16 %v1962, %v1961
        %v1977 = vpack.c.b16 %v1964, %v1963
        %v1978 = vpack.c.b16 %v1966, %v1965
        %v1979 = vpack.c.b16 %v1968, %v1967
        %v1980 = vpack.c.b16 %v1970, %v1969
        %v1981 = vpack.c.b16 %v1972, %v1971
        %v1982 = vpack.c.b16 %v1974, %v1973
        %1991 = vmatprep.subr.bf16.mxu0 0
        %1992 = vmatpush1.bf16.msra.mxu0 %v1975
        %1993 = vmatprep.subr.bf16.mxu0 0
        %1994 = vmatpush1.bf16.msra.mxu0 %v1976
        %1995 = vmatprep.subr.bf16.mxu0 0
        %1996 = vmatpush1.bf16.msra.mxu0 %v1977
        %1997 = vmatprep.subr.bf16.mxu0 0
        %1998 = vmatpush1.bf16.msra.mxu0 %v1978
        %1999 = vmatprep.subr.bf16.mxu0 0
        %2000 = vmatpush1.bf16.msra.mxu0 %v1979
        %2001 = vmatprep.subr.bf16.mxu0 0
        %2002 = vmatpush1.bf16.msra.mxu0 %v1980
        %2003 = vmatprep.subr.bf16.mxu0 0
        %2004 = vmatpush1.bf16.msra.mxu0 %v1981
        %2005 = vmatprep.subr.bf16.mxu0 0
        %2006 = vmatpush1.bf16.msra.mxu0 %v1982
        %2007 = vmatprep.subr.bf16.mxu0 0
        %2008 = vmatpush1.bf16.msra.mxu0 0
        %2009 = vmatprep.subr.bf16.mxu0 0
        %2010 = vmatpush1.bf16.msra.mxu0 0
        %2011 = vmatprep.subr.bf16.mxu0 0
        %2012 = vmatpush1.bf16.msra.mxu0 0
        %2013 = vmatprep.subr.bf16.mxu0 0
        %2014 = vmatpush1.bf16.msra.mxu0 0
        %2015 = vmatprep.subr.bf16.mxu0 0
        %2016 = vmatpush1.bf16.msra.mxu0 0
        %2017 = vmatprep.subr.bf16.mxu0 0
        %2018 = vmatpush1.bf16.msra.mxu0 0
        %2019 = vmatprep.subr.bf16.mxu0 0
        %2020 = vmatpush1.bf16.msra.mxu0 0
        %2021 = vmatprep.subr.bf16.mxu0 0
        %2022 = vmatpush1.bf16.msra.mxu0 0
        %2023 = vmatprep.mubr.bf16.mxu0 0
        %2024 = vmatmul.mubr.bf16.gmra.mrb[0].mxu0 %v1919
        %v2025 = vpop.f32.mrb[0].mxu0
        %v2026 = vadd.f32 %v1941, %v2025
        %v2027 = vpop.f32.mrb[0].mxu0
        %v2028 = vpop.f32.mrb[0].mxu0
        %v2029 = vadd.f32 %v1941, %v2028
        %v2030 = vpop.f32.mrb[0].mxu0
        %2031 = vdwg.mxu0
        %v2032 = vmul.f32 %v2026, 0.5
        %v2033 = vmul.f32 %v2029, 0.5
        %v2034 = vmul.f32 %v2026, 0.044715
        %v2035 = vmul.f32 %v2029, 0.044715
        %v2036 = vmul.f32 %v2034, %v2026
        %v2037 = vmul.f32 %v2035, %v2029
        %v2038 = vmul.f32 %v2036, %v2026
        %v2039 = vmul.f32 %v2037, %v2029
        %v2040 = vadd.f32 %v2026, %v2038
        %v2041 = vadd.f32 %v2029, %v2039
        %v2042 = vmul.f32 %v2040, 0.7978846
        %v2043 = vmul.f32 %v2041, 0.7978846
        %v2044 = vtanh.pop %v2042
        %v2045 = vtanh.pop %v2043
        %v2046 = vadd.f32 %v2044, 1.0
        %v2047 = vadd.f32 %v2045, 1.0
        %v2048 = vmul.f32 %v2032, %v2046
        %v2049 = vmul.f32 %v2033, %v2047
        %v2050 = vpack.c.bf16 %v2049, %v2048
        %v2051 = vld [vmem:[%s773] sm:$0xf]
        %v2052 = vld [vmem:[%s773 + $0x4] sm:$0xf]
        %v2053 = vld [vmem:[%s773 + $0x8] sm:$0xf]
        %v2054 = vld [vmem:[%s773 + $0xc] sm:$0xf]
        %v2055 = vld [vmem:[%s773 + $0x10] sm:$0xf]
        %v2056 = vld [vmem:[%s773 + $0x14] sm:$0xf]
        %v2057 = vld [vmem:[%s773 + $0x18] sm:$0xf]
        %v2058 = vld [vmem:[%s773 + $0x1c] sm:$0xf]
        %v2059 = vld [vmem:[%s773 + $0x20] sm:$0xf]
        %v2060 = vld [vmem:[%s773 + $0x24] sm:$0xf]
        %v2061 = vld [vmem:[%s773 + $0x28] sm:$0xf]
        %v2062 = vld [vmem:[%s773 + $0x2c] sm:$0xf]
        %v2063 = vld [vmem:[%s773 + $0x30] sm:$0xf]
        %v2064 = vld [vmem:[%s773 + $0x34] sm:$0xf]
        %v2065 = vld [vmem:[%s773 + $0x38] sm:$0xf]
        %v2066 = vld [vmem:[%s773 + $0x3c] sm:$0xf]
        %v2067 = vld [vmem:[%s885] sm:$0x1]
        %v2069 = vlaneseq
        %v2070 = vshrl.u32 %v2069, 7
        %v2071 = vsub.s32 0, %v2070
        %v2072 = vrot.slane %v2067, %v2071
        %v2090 = vunpack.c.l.b16 %v2051
        %v2091 = vunpack.c.l.b16 %v2052
        %v2092 = vunpack.c.l.b16 %v2053
        %v2093 = vunpack.c.l.b16 %v2054
        %v2094 = vunpack.c.l.b16 %v2055
        %v2095 = vunpack.c.l.b16 %v2056
        %v2096 = vunpack.c.l.b16 %v2057
        %v2097 = vunpack.c.l.b16 %v2058
        %v2098 = vunpack.c.l.b16 %v2059
        %v2099 = vunpack.c.l.b16 %v2060
        %v2100 = vunpack.c.l.b16 %v2061
        %v2101 = vunpack.c.l.b16 %v2062
        %v2102 = vunpack.c.l.b16 %v2063
        %v2103 = vunpack.c.l.b16 %v2064
        %v2104 = vunpack.c.l.b16 %v2065
        %v2105 = vunpack.c.l.b16 %v2066
        %v2106 = vpack.c.b16 %v2091, %v2090
        %v2107 = vpack.c.b16 %v2093, %v2092
        %v2108 = vpack.c.b16 %v2095, %v2094
        %v2109 = vpack.c.b16 %v2097, %v2096
        %v2110 = vpack.c.b16 %v2099, %v2098
        %v2111 = vpack.c.b16 %v2101, %v2100
        %v2112 = vpack.c.b16 %v2103, %v2102
        %v2113 = vpack.c.b16 %v2105, %v2104
        %2122 = vmatprep.subr.bf16.mxu0 0
        %2123 = vmatpush1.bf16.msra.mxu0 %v2106
        %2124 = vmatprep.subr.bf16.mxu0 0
        %2125 = vmatpush1.bf16.msra.mxu0 %v2107
        %2126 = vmatprep.subr.bf16.mxu0 0
        %2127 = vmatpush1.bf16.msra.mxu0 %v2108
        %2128 = vmatprep.subr.bf16.mxu0 0
        %2129 = vmatpush1.bf16.msra.mxu0 %v2109
        %2130 = vmatprep.subr.bf16.mxu0 0
        %2131 = vmatpush1.bf16.msra.mxu0 %v2110
        %2132 = vmatprep.subr.bf16.mxu0 0
        %2133 = vmatpush1.bf16.msra.mxu0 %v2111
        %2134 = vmatprep.subr.bf16.mxu0 0
        %2135 = vmatpush1.bf16.msra.mxu0 %v2112
        %2136 = vmatprep.subr.bf16.mxu0 0
        %2137 = vmatpush1.bf16.msra.mxu0 %v2113
        %2138 = vmatprep.subr.bf16.mxu0 0
        %2139 = vmatpush1.bf16.msra.mxu0 0
        %2140 = vmatprep.subr.bf16.mxu0 0
        %2141 = vmatpush1.bf16.msra.mxu0 0
        %2142 = vmatprep.subr.bf16.mxu0 0
        %2143 = vmatpush1.bf16.msra.mxu0 0
        %2144 = vmatprep.subr.bf16.mxu0 0
        %2145 = vmatpush1.bf16.msra.mxu0 0
        %2146 = vmatprep.subr.bf16.mxu0 0
        %2147 = vmatpush1.bf16.msra.mxu0 0
        %2148 = vmatprep.subr.bf16.mxu0 0
        %2149 = vmatpush1.bf16.msra.mxu0 0
        %2150 = vmatprep.subr.bf16.mxu0 0
        %2151 = vmatpush1.bf16.msra.mxu0 0
        %2152 = vmatprep.subr.bf16.mxu0 0
        %2153 = vmatpush1.bf16.msra.mxu0 0
        %2154 = vmatprep.mubr.bf16.mxu0 0
        %2155 = vmatmul.mubr.bf16.gmra.mrb[0].mxu0 %v2050
        %v2156 = vpop.f32.mrb[0].mxu0
        %v2157 = vadd.f32 %v2072, %v2156
        %v2158 = vpop.f32.mrb[0].mxu0
        %v2159 = vpop.f32.mrb[0].mxu0
        %v2160 = vadd.f32 %v2072, %v2159
        %v2161 = vpop.f32.mrb[0].mxu0
        %2162 = vdwg.mxu0
        %v2163 = vadd.f32 %v1917, %v2157
        %v2164 = vadd.f32 %v1918, %v2160
        %v2165 = vld [vmem:[%s888] sm:$0x1]
        %v2166 = vld [vmem:[%s891] sm:$0x1]
        %2167 = vadd.xlane.f32.xlu0 %v2163
        %v2168 = vpop.xlane.xlu0 %2167
        %2169 = vadd.xlane.f32.xlu0 %v2164
        %v2170 = vpop.xlane.xlu0 %2169
        %v2171 = vmul.f32 %v2168, 0.03125
        %v2172 = vmul.f32 %v2170, 0.03125
        %v2173 = vsub.f32 %v2163, %v2171
        %v2174 = vsub.f32 %v2164, %v2172
        %v2175 = vsel %vm1884, %v2173, 0.0
        %v2176 = vsel %vm1884, %v2174, 0.0
        %v2177 = vmul.f32 %v2175, %v2175
        %v2178 = vmul.f32 %v2176, %v2176
        %2179 = vadd.xlane.f32.xlu0 %v2177
        %v2180 = vpop.xlane.xlu0 %2179
        %2181 = vadd.xlane.f32.xlu0 %v2178
        %v2182 = vpop.xlane.xlu0 %2181
        %v2183 = vmul.f32 %v2180, 0.03125
        %v2184 = vmul.f32 %v2182, 0.03125
        %v2185 = vadd.f32 %v2183, 1e-12
        %v2186 = vadd.f32 %v2184, 1e-12
        %v2187 = vrsqrt.pop %v2185
        %v2188 = vrsqrt.pop %v2186
        %v2189 = vmul.f32 %v2175, %v2187
        %v2190 = vmul.f32 %v2176, %v2188
        %v2192 = vlaneseq
        %v2193 = vshrl.u32 %v2192, 7
        %v2194 = vsub.s32 0, %v2193
        %v2195 = vrot.slane %v2165, %v2194
        %v2197 = vmul.f32 %v2189, %v2195
        %v2198 = vmul.f32 %v2190, %v2195
        %v2200 = vlaneseq
        %v2201 = vshrl.u32 %v2200, 7
        %v2202 = vsub.s32 0, %v2201
        %v2203 = vrot.slane %v2166, %v2202
        %v2205 = vadd.f32 %v2197, %v2203
        %v2206 = vadd.f32 %v2198, %v2203
        %2207 = vst [vmem:[#allocation16] sm:$0xff] %v2205
        %2208 = vst [vmem:[#allocation16 + $0x8] sm:$0xff] %v2206
        %p2209 = scmp.eq.s32.totalorder %s42, 1
        // Predicated region
        $region129: #{tpu_custom_call.1} parent=91 // pred_check
          %p2210 = pneg %p2209
        $region130: #{tpu_custom_call.1} parent=91 // pred_check_branch
          %2212 = sbr.rel (%p2210) target = $region132
        $region131: #{tpu_custom_call.1} parent=91 // pred_region
          %v2214 = vrot.slane %v2206, 7
          %vm2216 = vcmask 1040384
          %v2217 = vsel %vm2216, %v2205, %v2214
          %v2218 = vpack.c.bf16 %v2217, %v2217
          %v2219 = vld [vmem:[#allocation14] sm:$0xf]
          %v2220 = vld [vmem:[#allocation14 + $0x4] sm:$0xf]
          %v2221 = vld [vmem:[#allocation14 + $0x8] sm:$0xf]
          %v2222 = vld [vmem:[#allocation14 + $0xc] sm:$0xf]
          %v2223 = vld [vmem:[#allocation14 + $0x10] sm:$0xf]
          %v2224 = vld [vmem:[#allocation14 + $0x14] sm:$0xf]
          %v2225 = vld [vmem:[#allocation14 + $0x18] sm:$0xf]
          %v2226 = vld [vmem:[#allocation14 + $0x1c] sm:$0xf]
          %v2227 = vld [vmem:[#allocation14 + $0x20] sm:$0xf]
          %v2228 = vld [vmem:[#allocation14 + $0x24] sm:$0xf]
          %v2229 = vld [vmem:[#allocation14 + $0x28] sm:$0xf]
          %v2230 = vld [vmem:[#allocation14 + $0x2c] sm:$0xf]
          %v2231 = vld [vmem:[#allocation14 + $0x30] sm:$0xf]
          %v2232 = vld [vmem:[#allocation14 + $0x34] sm:$0xf]
          %v2233 = vld [vmem:[#allocation14 + $0x38] sm:$0xf]
          %v2234 = vld [vmem:[#allocation14 + $0x3c] sm:$0xf]
          %v2235 = vld [vmem:[%s17] sm:$0x1]
          %v2237 = vlaneseq
          %v2238 = vshrl.u32 %v2237, 7
          %v2239 = vsub.s32 0, %v2238
          %v2240 = vrot.slane %v2235, %v2239
          %v2258 = vunpack.c.l.b16 %v2219
          %v2259 = vunpack.c.l.b16 %v2220
          %v2260 = vunpack.c.l.b16 %v2221
          %v2261 = vunpack.c.l.b16 %v2222
          %v2262 = vunpack.c.l.b16 %v2223
          %v2263 = vunpack.c.l.b16 %v2224
          %v2264 = vunpack.c.l.b16 %v2225
          %v2265 = vunpack.c.l.b16 %v2226
          %v2266 = vunpack.c.l.b16 %v2227
          %v2267 = vunpack.c.l.b16 %v2228
          %v2268 = vunpack.c.l.b16 %v2229
          %v2269 = vunpack.c.l.b16 %v2230
          %v2270 = vunpack.c.l.b16 %v2231
          %v2271 = vunpack.c.l.b16 %v2232
          %v2272 = vunpack.c.l.b16 %v2233
          %v2273 = vunpack.c.l.b16 %v2234
          %v2274 = vpack.c.b16 %v2259, %v2258
          %v2275 = vpack.c.b16 %v2261, %v2260
          %v2276 = vpack.c.b16 %v2263, %v2262
          %v2277 = vpack.c.b16 %v2265, %v2264
          %v2278 = vpack.c.b16 %v2267, %v2266
          %v2279 = vpack.c.b16 %v2269, %v2268
          %v2280 = vpack.c.b16 %v2271, %v2270
          %v2281 = vpack.c.b16 %v2273, %v2272
          %2290 = vmatprep.subr.bf16.mxu0 0
          %2291 = vmatpush1.bf16.msra.mxu0 %v2274
          %2292 = vmatprep.subr.bf16.mxu0 0
          %2293 = vmatpush1.bf16.msra.mxu0 %v2275
          %2294 = vmatprep.subr.bf16.mxu0 0
          %2295 = vmatpush1.bf16.msra.mxu0 %v2276
          %2296 = vmatprep.subr.bf16.mxu0 0
          %2297 = vmatpush1.bf16.msra.mxu0 %v2277
          %2298 = vmatprep.subr.bf16.mxu0 0
          %2299 = vmatpush1.bf16.msra.mxu0 %v2278
          %2300 = vmatprep.subr.bf16.mxu0 0
          %2301 = vmatpush1.bf16.msra.mxu0 %v2279
          %2302 = vmatprep.subr.bf16.mxu0 0
          %2303 = vmatpush1.bf16.msra.mxu0 %v2280
          %2304 = vmatprep.subr.bf16.mxu0 0
          %2305 = vmatpush1.bf16.msra.mxu0 %v2281
          %2306 = vmatprep.subr.bf16.mxu0 0
          %2307 = vmatpush1.bf16.msra.mxu0 0
          %2308 = vmatprep.subr.bf16.mxu0 0
          %2309 = vmatpush1.bf16.msra.mxu0 0
          %2310 = vmatprep.subr.bf16.mxu0 0
          %2311 = vmatpush1.bf16.msra.mxu0 0
          %2312 = vmatprep.subr.bf16.mxu0 0
          %2313 = vmatpush1.bf16.msra.mxu0 0
          %2314 = vmatprep.subr.bf16.mxu0 0
          %2315 = vmatpush1.bf16.msra.mxu0 0
          %2316 = vmatprep.subr.bf16.mxu0 0
          %2317 = vmatpush1.bf16.msra.mxu0 0
          %2318 = vmatprep.subr.bf16.mxu0 0
          %2319 = vmatpush1.bf16.msra.mxu0 0
          %2320 = vmatprep.subr.bf16.mxu0 0
          %2321 = vmatpush1.bf16.msra.mxu0 0
          %2322 = vmatprep.mubr.bf16.mxu0 0
          %2323 = vmatmul.mubr.bf16.gmra.mrb[0].mxu0 %v2218
          %v2324 = vpop.f32.mrb[0].mxu0
          %v2325 = vadd.f32 %v2240, %v2324
          %v2326 = vpop.f32.mrb[0].mxu0
          %v2327 = vpop.f32.mrb[0].mxu0
          %v2328 = vpop.f32.mrb[0].mxu0
          %2329 = vdwg.mxu0
          %v2330 = vtanh.pop %v2325
          %2331 = vst [vmem:[#allocation17] sm:$0x3] %v2330
        $region132: #{tpu_custom_call.1} parent=91 // pred_fallthru
          _
        // Predicated region
        $region133: #{tpu_custom_call.1} parent=91 // pred_check
          %p2332 = pneg %p493
        $region134: #{tpu_custom_call.1} parent=91 // pred_check_branch
          %2334 = sbr.rel (%p2332) target = $region136
        $region135: #{tpu_custom_call.1} parent=91 // pred_region
          %s2336 = ssub.s32 256, 256
          %2337 = vsyncadd [#allocation4], %s2336
          %s2338 = sshll.u32 [#allocation16], 4
          %s2339 = int_to_ptr.vmem [resolvable:$true] %s2338
          %2344 = dma.vmem_to_hbm [thread:$0]  %s2339, 256, %s18, [#allocation4], 128, 128, 8
        $region136: #{tpu_custom_call.1} parent=91 // pred_fallthru
          _
        // Predicated region
        $region137: #{tpu_custom_call.1} parent=91 // pred_check
          %p2345 = pneg %p514
        $region138: #{tpu_custom_call.1} parent=91 // pred_check_branch
          %2347 = sbr.rel (%p2345) target = $region140
        $region139: #{tpu_custom_call.1} parent=91 // pred_region
          %s2349 = ssub.s32 32, 32
          %2350 = vsyncadd [#allocation18], %s2349
          %s2352 = sshll.u32 [#allocation17], 4
          %s2353 = int_to_ptr.vmem [resolvable:$true] %s2352
          %2355 = dma.vmem_to_hbm [thread:$0]  %s2353, 32, %s19, [#allocation18]
        $region140: #{tpu_custom_call.1} parent=91 // pred_fallthru
          _
        // Predicated region
        $region141: #{tpu_custom_call.1} parent=91 // pred_check
          %p2356 = pneg %p493
        $region142: #{tpu_custom_call.1} parent=91 // pred_check_branch
          %2358 = sbr.rel (%p2356) target = $region144
        $region143: #{tpu_custom_call.1} parent=91 // pred_region
          %2359 = dma.done [#allocation4], 256
        $region144: #{tpu_custom_call.1} parent=91 // pred_fallthru
          _
        // Predicated region
        $region145: #{tpu_custom_call.1} parent=91 // pred_check
          %p2360 = pneg %p514
        $region146: #{tpu_custom_call.1} parent=91 // pred_check_branch
          %2362 = sbr.rel (%p2360) target = $region148
        $region147: #{tpu_custom_call.1} parent=91 // pred_region
          %2363 = dma.done [#allocation18], 32
        $region148: #{tpu_custom_call.1} parent=91 // pred_fallthru
          _
      $region92: #{tpu_custom_call.1} parent=5 // pred_fallthru
        _
      %p2364 = scmp.le.s32.totalorder 2, %s37
      // Predicated region
      $region149: #{tpu_custom_call.1} parent=5 // pred_check
        %p2365 = pneg %p2364
      $region150: #{tpu_custom_call.1} parent=5 // pred_check_branch
        %2367 = sbr.rel (%p2365) target = $region152
      $region151: #{tpu_custom_call.1} parent=5 // pred_region
        %s2368 = ssub.s32 %s37, 2
      $region152: #{tpu_custom_call.1} parent=5 // pred_fallthru
        _
    $region6: #{tpu_custom_call.1} parent=1 // loop_footer
      %s41 = sadd.s32 1, %s37
    $region7: #{tpu_custom_call.1} parent=1 // loop_footer_branch
      %36 = sbr.rel target = $region3
    $region8: #{tpu_custom_call.1} parent=1 // loop_exit
      _
    %2369 = vsyncpa [#allocation3], 1
    %s2370 = scalar_lea.sflag [#allocation3], 1
    %2371 = vsyncpa %s2370, 1
    %2372 = vsyncpa [#allocation6], 1
    %2373 = vsyncpa [#allocation9], 1
    %s2374 = scalar_lea.sflag [#allocation9], 1
    %2375 = vsyncpa %s2374, 1
    %2376 = vsyncpa [#allocation12], 1
    %s2377 = scalar_lea.sflag [#allocation12], 1
    %2378 = vsyncpa %s2377, 1
    %2379 = vsyncpa [#allocation15], 1
    %2380 = vsyncpa [#allocation4], 1
    %s2381 = scalar_lea.sflag [#allocation4], 1
    %2382 = vsyncpa %s2381, 1
    %2383 = vsyncpa [#allocation18], 1

</llo_original>
